<compile_context>
chip_gen: v5e
topology: v5e:2x2
jax: 0.10.0
libtpu: 0.0.40
codegen_flags: <defaults>
</compile_context>

<pallas_src>
import functools
import math

import jax
import jax.numpy as jnp
from jax.experimental import pallas as pl
from jax.experimental.pallas import tpu as pltpu


_LANE = 128
_LAYER_PARAM_NAMES = ("wqkv", "bqkv", "wo", "bo", "ln1_g", "ln1_b",
                      "w1", "b1", "w2", "b2", "ln2_g", "ln2_b")


# ----------------------------------------------------------------------------
# Fused kernel
# ----------------------------------------------------------------------------

def _layer_norm(x, gamma, beta, eps=1e-5):
    mu = jnp.mean(x, axis=-1, keepdims=True)
    xc = x - mu
    var = jnp.mean(xc * xc, axis=-1, keepdims=True)
    return xc * jax.lax.rsqrt(var + eps) * gamma + beta


def fused_forward_kernel(*refs, n_layers, n_heads):
    """Inputs (in order):
         x2d (BS, in_dim), pe2d (BS, D), mask_bias (BS, BS), in_w, in_b,
         n_layers x [wqkv, bqkv, wo, bo, ln1_g, ln1_b, w1, b1, w2, b2, ln2_g, ln2_b],
         head_w1, head_b1, head_w2_padded, head_b2_padded
       Output: (BS, 128) lane-dense block; first 3 lanes are the real logits.
    """
    out_ref = refs[-1]
    it = iter(refs[:-1])
    x_ref = next(it)
    pe_ref = next(it)
    mask_ref = next(it)
    in_w_ref = next(it)
    in_b_ref = next(it)
    layers = [tuple(next(it) for _ in range(len(_LAYER_PARAM_NAMES)))
              for _ in range(n_layers)]
    hw1_ref = next(it)
    hb1_ref = next(it)
    hw2_ref = next(it)
    hb2_ref = next(it)

    # ---- input projection + positional encoding (rows = B*S, lanes = D) -----
    x = jnp.dot(x_ref[...], in_w_ref[...], preferred_element_type=jnp.float32)
    x = x + in_b_ref[...] + pe_ref[...]

    d_model = x.shape[-1]
    d_head = d_model // n_heads
    mask_bias = mask_ref[...]       # 0 within a batch element, -1e30 across

    # ---- encoder layers (unrolled; weights stay resident in VMEM) -----------
    for (wqkv, bqkv, wo, bo, g1, be1, w1, b1, w2, b2, g2, be2) in layers:
        # fused QKV projection; 1/sqrt(d_head) already folded into the Q block.
        qkv = jnp.dot(x, wqkv[...], preferred_element_type=jnp.float32) + bqkv[...]

        # multi-head self-attention over folded (B*S) rows.
        ctx_heads = []
        for h in range(n_heads):
            lo = h * d_head
            q_h = qkv[:, lo:lo + d_head]
            k_h = qkv[:, d_model + lo:d_model + lo + d_head]
            v_h = qkv[:, 2 * d_model + lo:2 * d_model + lo + d_head]
            s = jnp.dot(q_h, k_h.T, preferred_element_type=jnp.float32) + mask_bias
            s = s - jnp.max(s, axis=-1, keepdims=True)
            p = jnp.exp(s)
            inv = pl.reciprocal(jnp.sum(p, axis=-1, keepdims=True), approx=True)
            p = p * inv
            ctx_heads.append(jnp.dot(p, v_h, preferred_element_type=jnp.float32))
        ctx = jnp.concatenate(ctx_heads, axis=-1)               # (BS, D)
        attn = jnp.dot(ctx, wo[...], preferred_element_type=jnp.float32) + bo[...]

        # residual + LayerNorm1 (post-norm)
        x = _layer_norm(x + attn, g1[...], be1[...])

        # feed-forward (ReLU), dropout = identity
        h1 = jnp.dot(x, w1[...], preferred_element_type=jnp.float32) + b1[...]
        h1 = jnp.maximum(h1, 0.0)
        ff = jnp.dot(h1, w2[...], preferred_element_type=jnp.float32) + b2[...]

        # residual + LayerNorm2
        x = _layer_norm(x + ff, g2[...], be2[...])

    # ---- output head: Linear -> ReLU -> (Dropout=id) -> Linear (lane-padded) -
    hh = jnp.dot(x, hw1_ref[...], preferred_element_type=jnp.float32) + hb1_ref[...]
    hh = jnp.maximum(hh, 0.0)
    out_ref[...] = (jnp.dot(hh, hw2_ref[...], preferred_element_type=jnp.float32)
                    + hb2_ref[...])


# ----------------------------------------------------------------------------
# Wrapper
# ----------------------------------------------------------------------------

def transformer_price_predictor_forward(x, params):
    """x: (batch, seq, input_dim) float32 -> (batch, seq, 3) float32."""
    B, S, in_dim = x.shape
    D = params["in_w"].shape[1]
    n_heads = params["n_heads"]
    n_layers = len(params["layers"])
    n_out = params["n_out"]
    BS = B * S

    # Fold batch into rows; build the matching positional encoding and the
    # block-diagonal additive mask that keeps attention inside each sequence.
    x2d = x.reshape(BS, in_dim).astype(jnp.float32)
    pe2d = jnp.tile(params["pos_encoding"][:S, :], (B, 1))
    row_batch = jnp.arange(BS, dtype=jnp.int32) // S
    mask_bias = jnp.where(row_batch[:, None] == row_batch[None, :],
                          0.0, -1e30).astype(jnp.float32)

    args = [x2d, pe2d, mask_bias, params["in_w"], params["in_b"]]
    for lp in params["layers"]:
        args += [lp[name] for name in _LAYER_PARAM_NAMES]
    args += [params["head_w1"], params["head_b1"],
             params["head_w2"], params["head_b2"]]

    vmem_spec = pl.BlockSpec(memory_space=pltpu.MemorySpace.VMEM)
    out_padded = pl.pallas_call(
        functools.partial(fused_forward_kernel,
                          n_layers=n_layers, n_heads=n_heads),
        out_shape=jax.ShapeDtypeStruct((BS, _LANE), jnp.float32),
        in_specs=[vmem_spec] * len(args),
        out_specs=vmem_spec,
    )(*args)

    # lane-dense kernel output -> real (B, S, 3) logits
    return out_padded[:, :n_out].reshape(B, S, n_out)


# ----------------------------------------------------------------------------
# Deterministic parameter init (synthetic; shapes follow the PyTorch module)
# ----------------------------------------------------------------------------

def make_positional_encoding(max_len, d_model):
    position = jnp.arange(max_len, dtype=jnp.float32)[:, None]
    div_term = jnp.exp(jnp.arange(0, d_model, 2, dtype=jnp.float32)
                       * -(math.log(10000.0) / d_model))
    pe = jnp.zeros((max_len, d_model), dtype=jnp.float32)
    pe = pe.at[:, 0::2].set(jnp.sin(position * div_term))
    pe = pe.at[:, 1::2].set(jnp.cos(position * div_term))
    return pe


def init_params(key, input_dim, d_model, n_heads, n_layers, d_ff, max_seq_length):
    # Robust key generator: never runs out (fixes the StopIteration bug).
    def _keygen():
        i = 0
        while True:
            yield jax.random.fold_in(key, i)
            i += 1
    kg = _keygen()

    def w(shape, scale=0.05):
        return (scale * jax.random.normal(next(kg), shape)).astype(jnp.float32)

    d_head = d_model // n_heads
    attn_scale = 1.0 / math.sqrt(d_head)
    n_out = 3

    params = {
        "n_heads": n_heads,
        "n_out": n_out,
        "pos_encoding": make_positional_encoding(max_seq_length, d_model),
        # Linear weights stored as (in_features, out_features): y = x @ W + b
        "in_w": w((input_dim, d_model)),
        "in_b": w((1, d_model)),
        "head_w1": w((d_model, d_model // 2)),
        "head_b1": w((1, d_model // 2)),
        "layers": [],
    }

    # Final Linear(d_model//2, 3): zero-pad to 128 output lanes so the kernel's
    # output block is lane-dense; real logits are columns [:3].
    head_w2 = w((d_model // 2, n_out))
    head_b2 = w((1, n_out))
    params["head_w2"] = jnp.pad(head_w2, ((0, 0), (0, _LANE - n_out)))
    params["head_b2"] = jnp.pad(head_b2, ((0, 0), (0, _LANE - n_out)))

    for _ in range(n_layers):
        wq = w((d_model, d_model))
        wk = w((d_model, d_model))
        wv = w((d_model, d_model))
        bq = w((1, d_model))
        bk = w((1, d_model))
        bv = w((1, d_model))
        lp = {
            # merged QKV projection with the attention scale folded into Q
            "wqkv": jnp.concatenate([wq * attn_scale, wk, wv], axis=1),
            "bqkv": jnp.concatenate([bq * attn_scale, bk, bv], axis=1),
            "wo": w((d_model, d_model)),
            "bo": w((1, d_model)),
            "ln1_g": jnp.ones((1, d_model), jnp.float32),
            "ln1_b": jnp.zeros((1, d_model), jnp.float32),
            "w1": w((d_model, d_ff)),
            "b1": w((1, d_ff)),
            "w2": w((d_ff, d_model)),
            "b2": w((1, d_model)),
            "ln2_g": jnp.ones((1, d_model), jnp.float32),
            "ln2_b": jnp.zeros((1, d_model), jnp.float32),
        }
        params["layers"].append(lp)
    return params


# ----------------------------------------------------------------------------
# Main
# ----------------------------------------------------------------------------

if __name__ == "__main__":
    # Small, module-consistent shapes.
    batch, seq_len, input_dim = 2, 8, 4
    d_model, n_heads, n_layers, d_ff = 32, 4, 2, 64
    max_seq_length = 64

    key = jax.random.PRNGKey(0)
    kx, kp = jax.random.split(key)
    x = jax.random.normal(kx, (batch, seq_len, input_dim), dtype=jnp.float32)
    params = init_params(kp, input_dim, d_model, n_heads, n_layers, d_ff,
                         max_seq_length)

    out = transformer_price_predictor_forward(x, params)
    out = jax.block_until_ready(out)
    assert out.shape == (batch, seq_len, 3), out.shape
    assert out.dtype == jnp.float32
    assert bool(jnp.all(jnp.isfinite(out)))
    print("KERNEL_OK")
</pallas_src>

<mosaic_0001>
module attributes {stable_mosaic.version = 11 : i64} {
  func.func @fused_forward_kernel(%arg0: memref<16x4xf32, #tpu.memory_space<vmem>>, %arg1: memref<16x32xf32, #tpu.memory_space<vmem>>, %arg2: memref<16x16xf32, #tpu.memory_space<vmem>>, %arg3: memref<4x32xf32, #tpu.memory_space<vmem>>, %arg4: memref<1x32xf32, #tpu.memory_space<vmem>>, %arg5: memref<32x96xf32, #tpu.memory_space<vmem>>, %arg6: memref<1x96xf32, #tpu.memory_space<vmem>>, %arg7: memref<32x32xf32, #tpu.memory_space<vmem>>, %arg8: memref<1x32xf32, #tpu.memory_space<vmem>>, %arg9: memref<1x32xf32, #tpu.memory_space<vmem>>, %arg10: memref<1x32xf32, #tpu.memory_space<vmem>>, %arg11: memref<32x64xf32, #tpu.memory_space<vmem>>, %arg12: memref<1x64xf32, #tpu.memory_space<vmem>>, %arg13: memref<64x32xf32, #tpu.memory_space<vmem>>, %arg14: memref<1x32xf32, #tpu.memory_space<vmem>>, %arg15: memref<1x32xf32, #tpu.memory_space<vmem>>, %arg16: memref<1x32xf32, #tpu.memory_space<vmem>>, %arg17: memref<32x96xf32, #tpu.memory_space<vmem>>, %arg18: memref<1x96xf32, #tpu.memory_space<vmem>>, %arg19: memref<32x32xf32, #tpu.memory_space<vmem>>, %arg20: memref<1x32xf32, #tpu.memory_space<vmem>>, %arg21: memref<1x32xf32, #tpu.memory_space<vmem>>, %arg22: memref<1x32xf32, #tpu.memory_space<vmem>>, %arg23: memref<32x64xf32, #tpu.memory_space<vmem>>, %arg24: memref<1x64xf32, #tpu.memory_space<vmem>>, %arg25: memref<64x32xf32, #tpu.memory_space<vmem>>, %arg26: memref<1x32xf32, #tpu.memory_space<vmem>>, %arg27: memref<1x32xf32, #tpu.memory_space<vmem>>, %arg28: memref<1x32xf32, #tpu.memory_space<vmem>>, %arg29: memref<32x16xf32, #tpu.memory_space<vmem>>, %arg30: memref<1x16xf32, #tpu.memory_space<vmem>>, %arg31: memref<16x128xf32, #tpu.memory_space<vmem>>, %arg32: memref<1x128xf32, #tpu.memory_space<vmem>>, %arg33: memref<16x128xf32, #tpu.memory_space<vmem>>) attributes {dimension_semantics = [], scalar_prefetch = 0 : i64, scratch_operands = 0 : i64, tpu.core_type = #tpu.core_type<tc>} {
    %c0 = arith.constant 0 : index
    %c0_0 = arith.constant 0 : index
    %0 = vector.load %arg0[%c0, %c0_0] : memref<16x4xf32, #tpu.memory_space<vmem>>, vector<16x4xf32>
    %c0_1 = arith.constant 0 : index
    %c0_2 = arith.constant 0 : index
    %1 = vector.load %arg3[%c0_1, %c0_2] : memref<4x32xf32, #tpu.memory_space<vmem>>, vector<4x32xf32>
    %cst = arith.constant dense<0.000000e+00> : vector<16x32xf32>
    %2 = tpu.matmul %0, %1, %cst {dimension_numbers = #tpu.dot_dimension_numbers<[1], [0], [0], [1], [0, 0, 1, 1], [], []>} : vector<16x4xf32>, vector<4x32xf32>, vector<16x32xf32> -> vector<16x32xf32>
    %c0_3 = arith.constant 0 : index
    %c0_4 = arith.constant 0 : index
    %3 = vector.load %arg4[%c0_3, %c0_4] : memref<1x32xf32, #tpu.memory_space<vmem>>, vector<1x32xf32>
    %4 = vector.broadcast %3 : vector<1x32xf32> to vector<16x32xf32>
    %5 = arith.addf %2, %4 : vector<16x32xf32>
    %c0_5 = arith.constant 0 : index
    %c0_6 = arith.constant 0 : index
    %6 = vector.load %arg1[%c0_5, %c0_6] : memref<16x32xf32, #tpu.memory_space<vmem>>, vector<16x32xf32>
    %7 = arith.addf %5, %6 : vector<16x32xf32>
    %c0_7 = arith.constant 0 : index
    %c0_8 = arith.constant 0 : index
    %8 = vector.load %arg2[%c0_7, %c0_8] : memref<16x16xf32, #tpu.memory_space<vmem>>, vector<16x16xf32>
    %c0_9 = arith.constant 0 : index
    %c0_10 = arith.constant 0 : index
    %9 = vector.load %arg5[%c0_9, %c0_10] : memref<32x96xf32, #tpu.memory_space<vmem>>, vector<32x96xf32>
    %cst_11 = arith.constant dense<0.000000e+00> : vector<16x96xf32>
    %10 = tpu.matmul %7, %9, %cst_11 {dimension_numbers = #tpu.dot_dimension_numbers<[1], [0], [0], [1], [0, 0, 1, 1], [], []>} : vector<16x32xf32>, vector<32x96xf32>, vector<16x96xf32> -> vector<16x96xf32>
    %c0_12 = arith.constant 0 : index
    %c0_13 = arith.constant 0 : index
    %11 = vector.load %arg6[%c0_12, %c0_13] : memref<1x96xf32, #tpu.memory_space<vmem>>, vector<1x96xf32>
    %12 = vector.broadcast %11 : vector<1x96xf32> to vector<16x96xf32>
    %13 = arith.addf %10, %12 : vector<16x96xf32>
    %14 = vector.extract_strided_slice %13 {offsets = [0, 0], sizes = [16, 8], strides = [1, 1]} : vector<16x96xf32> to vector<16x8xf32>
    %15 = vector.extract_strided_slice %13 {offsets = [0, 32], sizes = [16, 8], strides = [1, 1]} : vector<16x96xf32> to vector<16x8xf32>
    %16 = vector.extract_strided_slice %13 {offsets = [0, 64], sizes = [16, 8], strides = [1, 1]} : vector<16x96xf32> to vector<16x8xf32>
    %17 = tpu.transpose %15, [1, 0] : vector<16x8xf32> -> vector<8x16xf32>
    %cst_14 = arith.constant dense<0.000000e+00> : vector<16x16xf32>
    %18 = tpu.matmul %14, %17, %cst_14 {dimension_numbers = #tpu.dot_dimension_numbers<[1], [0], [0], [1], [0, 0, 1, 1], [], []>} : vector<16x8xf32>, vector<8x16xf32>, vector<16x16xf32> -> vector<16x16xf32>
    %19 = arith.addf %18, %8 : vector<16x16xf32>
    %cst_15 = arith.constant dense<0xFF800000> : vector<16xf32>
    %20 = vector.multi_reduction <maximumf>, %19, %cst_15 [1] : vector<16x16xf32> to vector<16xf32>
    %21 = vector.shape_cast %20 : vector<16xf32> to vector<16x1xf32>
    %22 = vector.broadcast %21 : vector<16x1xf32> to vector<16x16xf32>
    %23 = arith.subf %19, %22 : vector<16x16xf32>
    %24 = math.exp %23 : vector<16x16xf32>
    %cst_16 = arith.constant dense<0.000000e+00> : vector<16xf32>
    %25 = vector.multi_reduction <add>, %24, %cst_16 [1] : vector<16x16xf32> to vector<16xf32>
    %26 = vector.shape_cast %25 : vector<16xf32> to vector<16x1xf32>
    %27 = tpu.reciprocal %26 {approx = true} : vector<16x1xf32> -> vector<16x1xf32>
    %28 = vector.broadcast %27 : vector<16x1xf32> to vector<16x16xf32>
    %29 = arith.mulf %24, %28 : vector<16x16xf32>
    %cst_17 = arith.constant dense<0.000000e+00> : vector<16x8xf32>
    %30 = tpu.matmul %29, %16, %cst_17 {dimension_numbers = #tpu.dot_dimension_numbers<[1], [0], [0], [1], [0, 0, 1, 1], [], []>} : vector<16x16xf32>, vector<16x8xf32>, vector<16x8xf32> -> vector<16x8xf32>
    %31 = vector.extract_strided_slice %13 {offsets = [0, 8], sizes = [16, 8], strides = [1, 1]} : vector<16x96xf32> to vector<16x8xf32>
    %32 = vector.extract_strided_slice %13 {offsets = [0, 40], sizes = [16, 8], strides = [1, 1]} : vector<16x96xf32> to vector<16x8xf32>
    %33 = vector.extract_strided_slice %13 {offsets = [0, 72], sizes = [16, 8], strides = [1, 1]} : vector<16x96xf32> to vector<16x8xf32>
    %34 = tpu.transpose %32, [1, 0] : vector<16x8xf32> -> vector<8x16xf32>
    %cst_18 = arith.constant dense<0.000000e+00> : vector<16x16xf32>
    %35 = tpu.matmul %31, %34, %cst_18 {dimension_numbers = #tpu.dot_dimension_numbers<[1], [0], [0], [1], [0, 0, 1, 1], [], []>} : vector<16x8xf32>, vector<8x16xf32>, vector<16x16xf32> -> vector<16x16xf32>
    %36 = arith.addf %35, %8 : vector<16x16xf32>
    %cst_19 = arith.constant dense<0xFF800000> : vector<16xf32>
    %37 = vector.multi_reduction <maximumf>, %36, %cst_19 [1] : vector<16x16xf32> to vector<16xf32>
    %38 = vector.shape_cast %37 : vector<16xf32> to vector<16x1xf32>
    %39 = vector.broadcast %38 : vector<16x1xf32> to vector<16x16xf32>
    %40 = arith.subf %36, %39 : vector<16x16xf32>
    %41 = math.exp %40 : vector<16x16xf32>
    %cst_20 = arith.constant dense<0.000000e+00> : vector<16xf32>
    %42 = vector.multi_reduction <add>, %41, %cst_20 [1] : vector<16x16xf32> to vector<16xf32>
    %43 = vector.shape_cast %42 : vector<16xf32> to vector<16x1xf32>
    %44 = tpu.reciprocal %43 {approx = true} : vector<16x1xf32> -> vector<16x1xf32>
    %45 = vector.broadcast %44 : vector<16x1xf32> to vector<16x16xf32>
    %46 = arith.mulf %41, %45 : vector<16x16xf32>
    %cst_21 = arith.constant dense<0.000000e+00> : vector<16x8xf32>
    %47 = tpu.matmul %46, %33, %cst_21 {dimension_numbers = #tpu.dot_dimension_numbers<[1], [0], [0], [1], [0, 0, 1, 1], [], []>} : vector<16x16xf32>, vector<16x8xf32>, vector<16x8xf32> -> vector<16x8xf32>
    %48 = vector.extract_strided_slice %13 {offsets = [0, 16], sizes = [16, 8], strides = [1, 1]} : vector<16x96xf32> to vector<16x8xf32>
    %49 = vector.extract_strided_slice %13 {offsets = [0, 48], sizes = [16, 8], strides = [1, 1]} : vector<16x96xf32> to vector<16x8xf32>
    %50 = vector.extract_strided_slice %13 {offsets = [0, 80], sizes = [16, 8], strides = [1, 1]} : vector<16x96xf32> to vector<16x8xf32>
    %51 = tpu.transpose %49, [1, 0] : vector<16x8xf32> -> vector<8x16xf32>
    %cst_22 = arith.constant dense<0.000000e+00> : vector<16x16xf32>
    %52 = tpu.matmul %48, %51, %cst_22 {dimension_numbers = #tpu.dot_dimension_numbers<[1], [0], [0], [1], [0, 0, 1, 1], [], []>} : vector<16x8xf32>, vector<8x16xf32>, vector<16x16xf32> -> vector<16x16xf32>
    %53 = arith.addf %52, %8 : vector<16x16xf32>
    %cst_23 = arith.constant dense<0xFF800000> : vector<16xf32>
    %54 = vector.multi_reduction <maximumf>, %53, %cst_23 [1] : vector<16x16xf32> to vector<16xf32>
    %55 = vector.shape_cast %54 : vector<16xf32> to vector<16x1xf32>
    %56 = vector.broadcast %55 : vector<16x1xf32> to vector<16x16xf32>
    %57 = arith.subf %53, %56 : vector<16x16xf32>
    %58 = math.exp %57 : vector<16x16xf32>
    %cst_24 = arith.constant dense<0.000000e+00> : vector<16xf32>
    %59 = vector.multi_reduction <add>, %58, %cst_24 [1] : vector<16x16xf32> to vector<16xf32>
    %60 = vector.shape_cast %59 : vector<16xf32> to vector<16x1xf32>
    %61 = tpu.reciprocal %60 {approx = true} : vector<16x1xf32> -> vector<16x1xf32>
    %62 = vector.broadcast %61 : vector<16x1xf32> to vector<16x16xf32>
    %63 = arith.mulf %58, %62 : vector<16x16xf32>
    %cst_25 = arith.constant dense<0.000000e+00> : vector<16x8xf32>
    %64 = tpu.matmul %63, %50, %cst_25 {dimension_numbers = #tpu.dot_dimension_numbers<[1], [0], [0], [1], [0, 0, 1, 1], [], []>} : vector<16x16xf32>, vector<16x8xf32>, vector<16x8xf32> -> vector<16x8xf32>
    %65 = vector.extract_strided_slice %13 {offsets = [0, 24], sizes = [16, 8], strides = [1, 1]} : vector<16x96xf32> to vector<16x8xf32>
    %66 = vector.extract_strided_slice %13 {offsets = [0, 56], sizes = [16, 8], strides = [1, 1]} : vector<16x96xf32> to vector<16x8xf32>
    %67 = vector.extract_strided_slice %13 {offsets = [0, 88], sizes = [16, 8], strides = [1, 1]} : vector<16x96xf32> to vector<16x8xf32>
    %68 = tpu.transpose %66, [1, 0] : vector<16x8xf32> -> vector<8x16xf32>
    %cst_26 = arith.constant dense<0.000000e+00> : vector<16x16xf32>
    %69 = tpu.matmul %65, %68, %cst_26 {dimension_numbers = #tpu.dot_dimension_numbers<[1], [0], [0], [1], [0, 0, 1, 1], [], []>} : vector<16x8xf32>, vector<8x16xf32>, vector<16x16xf32> -> vector<16x16xf32>
    %70 = arith.addf %69, %8 : vector<16x16xf32>
    %cst_27 = arith.constant dense<0xFF800000> : vector<16xf32>
    %71 = vector.multi_reduction <maximumf>, %70, %cst_27 [1] : vector<16x16xf32> to vector<16xf32>
    %72 = vector.shape_cast %71 : vector<16xf32> to vector<16x1xf32>
    %73 = vector.broadcast %72 : vector<16x1xf32> to vector<16x16xf32>
    %74 = arith.subf %70, %73 : vector<16x16xf32>
    %75 = math.exp %74 : vector<16x16xf32>
    %cst_28 = arith.constant dense<0.000000e+00> : vector<16xf32>
    %76 = vector.multi_reduction <add>, %75, %cst_28 [1] : vector<16x16xf32> to vector<16xf32>
    %77 = vector.shape_cast %76 : vector<16xf32> to vector<16x1xf32>
    %78 = tpu.reciprocal %77 {approx = true} : vector<16x1xf32> -> vector<16x1xf32>
    %79 = vector.broadcast %78 : vector<16x1xf32> to vector<16x16xf32>
    %80 = arith.mulf %75, %79 : vector<16x16xf32>
    %cst_29 = arith.constant dense<0.000000e+00> : vector<16x8xf32>
    %81 = tpu.matmul %80, %67, %cst_29 {dimension_numbers = #tpu.dot_dimension_numbers<[1], [0], [0], [1], [0, 0, 1, 1], [], []>} : vector<16x16xf32>, vector<16x8xf32>, vector<16x8xf32> -> vector<16x8xf32>
    %82 = tpu.concatenate %30, %47, %64, %81 in 1 : vector<16x8xf32>, vector<16x8xf32>, vector<16x8xf32>, vector<16x8xf32> -> vector<16x32xf32>
    %c0_30 = arith.constant 0 : index
    %c0_31 = arith.constant 0 : index
    %83 = vector.load %arg7[%c0_30, %c0_31] : memref<32x32xf32, #tpu.memory_space<vmem>>, vector<32x32xf32>
    %cst_32 = arith.constant dense<0.000000e+00> : vector<16x32xf32>
    %84 = tpu.matmul %82, %83, %cst_32 {dimension_numbers = #tpu.dot_dimension_numbers<[1], [0], [0], [1], [0, 0, 1, 1], [], []>} : vector<16x32xf32>, vector<32x32xf32>, vector<16x32xf32> -> vector<16x32xf32>
    %c0_33 = arith.constant 0 : index
    %c0_34 = arith.constant 0 : index
    %85 = vector.load %arg8[%c0_33, %c0_34] : memref<1x32xf32, #tpu.memory_space<vmem>>, vector<1x32xf32>
    %86 = vector.broadcast %85 : vector<1x32xf32> to vector<16x32xf32>
    %87 = arith.addf %84, %86 : vector<16x32xf32>
    %88 = arith.addf %7, %87 : vector<16x32xf32>
    %c0_35 = arith.constant 0 : index
    %c0_36 = arith.constant 0 : index
    %89 = vector.load %arg9[%c0_35, %c0_36] : memref<1x32xf32, #tpu.memory_space<vmem>>, vector<1x32xf32>
    %c0_37 = arith.constant 0 : index
    %c0_38 = arith.constant 0 : index
    %90 = vector.load %arg10[%c0_37, %c0_38] : memref<1x32xf32, #tpu.memory_space<vmem>>, vector<1x32xf32>
    %cst_39 = arith.constant dense<0.000000e+00> : vector<16xf32>
    %91 = vector.multi_reduction <add>, %88, %cst_39 [1] : vector<16x32xf32> to vector<16xf32>
    %92 = vector.shape_cast %91 : vector<16xf32> to vector<16x1xf32>
    %cst_40 = arith.constant 3.200000e+01 : f32
    %93 = vector.broadcast %cst_40 : f32 to vector<16x1xf32>
    %94 = arith.divf %92, %93 : vector<16x1xf32>
    %95 = vector.broadcast %94 : vector<16x1xf32> to vector<16x32xf32>
    %96 = arith.subf %88, %95 : vector<16x32xf32>
    %97 = arith.mulf %96, %96 : vector<16x32xf32>
    %cst_41 = arith.constant dense<0.000000e+00> : vector<16xf32>
    %98 = vector.multi_reduction <add>, %97, %cst_41 [1] : vector<16x32xf32> to vector<16xf32>
    %99 = vector.shape_cast %98 : vector<16xf32> to vector<16x1xf32>
    %cst_42 = arith.constant 3.200000e+01 : f32
    %100 = vector.broadcast %cst_42 : f32 to vector<16x1xf32>
    %101 = arith.divf %99, %100 : vector<16x1xf32>
    %cst_43 = arith.constant 9.99999974E-6 : f32
    %102 = vector.broadcast %cst_43 : f32 to vector<16x1xf32>
    %103 = arith.addf %101, %102 : vector<16x1xf32>
    %104 = math.rsqrt %103 : vector<16x1xf32>
    %105 = vector.broadcast %104 : vector<16x1xf32> to vector<16x32xf32>
    %106 = arith.mulf %96, %105 : vector<16x32xf32>
    %107 = vector.broadcast %89 : vector<1x32xf32> to vector<16x32xf32>
    %108 = arith.mulf %106, %107 : vector<16x32xf32>
    %109 = vector.broadcast %90 : vector<1x32xf32> to vector<16x32xf32>
    %110 = arith.addf %108, %109 : vector<16x32xf32>
    %c0_44 = arith.constant 0 : index
    %c0_45 = arith.constant 0 : index
    %111 = vector.load %arg11[%c0_44, %c0_45] : memref<32x64xf32, #tpu.memory_space<vmem>>, vector<32x64xf32>
    %cst_46 = arith.constant dense<0.000000e+00> : vector<16x64xf32>
    %112 = tpu.matmul %110, %111, %cst_46 {dimension_numbers = #tpu.dot_dimension_numbers<[1], [0], [0], [1], [0, 0, 1, 1], [], []>} : vector<16x32xf32>, vector<32x64xf32>, vector<16x64xf32> -> vector<16x64xf32>
    %c0_47 = arith.constant 0 : index
    %c0_48 = arith.constant 0 : index
    %113 = vector.load %arg12[%c0_47, %c0_48] : memref<1x64xf32, #tpu.memory_space<vmem>>, vector<1x64xf32>
    %114 = vector.broadcast %113 : vector<1x64xf32> to vector<16x64xf32>
    %115 = arith.addf %112, %114 : vector<16x64xf32>
    %cst_49 = arith.constant 0.000000e+00 : f32
    %116 = vector.broadcast %cst_49 : f32 to vector<16x64xf32>
    %117 = arith.maximumf %115, %116 : vector<16x64xf32>
    %c0_50 = arith.constant 0 : index
    %c0_51 = arith.constant 0 : index
    %118 = vector.load %arg13[%c0_50, %c0_51] : memref<64x32xf32, #tpu.memory_space<vmem>>, vector<64x32xf32>
    %cst_52 = arith.constant dense<0.000000e+00> : vector<16x32xf32>
    %119 = tpu.matmul %117, %118, %cst_52 {dimension_numbers = #tpu.dot_dimension_numbers<[1], [0], [0], [1], [0, 0, 1, 1], [], []>} : vector<16x64xf32>, vector<64x32xf32>, vector<16x32xf32> -> vector<16x32xf32>
    %c0_53 = arith.constant 0 : index
    %c0_54 = arith.constant 0 : index
    %120 = vector.load %arg14[%c0_53, %c0_54] : memref<1x32xf32, #tpu.memory_space<vmem>>, vector<1x32xf32>
    %121 = vector.broadcast %120 : vector<1x32xf32> to vector<16x32xf32>
    %122 = arith.addf %119, %121 : vector<16x32xf32>
    %123 = arith.addf %110, %122 : vector<16x32xf32>
    %c0_55 = arith.constant 0 : index
    %c0_56 = arith.constant 0 : index
    %124 = vector.load %arg15[%c0_55, %c0_56] : memref<1x32xf32, #tpu.memory_space<vmem>>, vector<1x32xf32>
    %c0_57 = arith.constant 0 : index
    %c0_58 = arith.constant 0 : index
    %125 = vector.load %arg16[%c0_57, %c0_58] : memref<1x32xf32, #tpu.memory_space<vmem>>, vector<1x32xf32>
    %cst_59 = arith.constant dense<0.000000e+00> : vector<16xf32>
    %126 = vector.multi_reduction <add>, %123, %cst_59 [1] : vector<16x32xf32> to vector<16xf32>
    %127 = vector.shape_cast %126 : vector<16xf32> to vector<16x1xf32>
    %cst_60 = arith.constant 3.200000e+01 : f32
    %128 = vector.broadcast %cst_60 : f32 to vector<16x1xf32>
    %129 = arith.divf %127, %128 : vector<16x1xf32>
    %130 = vector.broadcast %129 : vector<16x1xf32> to vector<16x32xf32>
    %131 = arith.subf %123, %130 : vector<16x32xf32>
    %132 = arith.mulf %131, %131 : vector<16x32xf32>
    %cst_61 = arith.constant dense<0.000000e+00> : vector<16xf32>
    %133 = vector.multi_reduction <add>, %132, %cst_61 [1] : vector<16x32xf32> to vector<16xf32>
    %134 = vector.shape_cast %133 : vector<16xf32> to vector<16x1xf32>
    %cst_62 = arith.constant 3.200000e+01 : f32
    %135 = vector.broadcast %cst_62 : f32 to vector<16x1xf32>
    %136 = arith.divf %134, %135 : vector<16x1xf32>
    %cst_63 = arith.constant 9.99999974E-6 : f32
    %137 = vector.broadcast %cst_63 : f32 to vector<16x1xf32>
    %138 = arith.addf %136, %137 : vector<16x1xf32>
    %139 = math.rsqrt %138 : vector<16x1xf32>
    %140 = vector.broadcast %139 : vector<16x1xf32> to vector<16x32xf32>
    %141 = arith.mulf %131, %140 : vector<16x32xf32>
    %142 = vector.broadcast %124 : vector<1x32xf32> to vector<16x32xf32>
    %143 = arith.mulf %141, %142 : vector<16x32xf32>
    %144 = vector.broadcast %125 : vector<1x32xf32> to vector<16x32xf32>
    %145 = arith.addf %143, %144 : vector<16x32xf32>
    %c0_64 = arith.constant 0 : index
    %c0_65 = arith.constant 0 : index
    %146 = vector.load %arg17[%c0_64, %c0_65] : memref<32x96xf32, #tpu.memory_space<vmem>>, vector<32x96xf32>
    %cst_66 = arith.constant dense<0.000000e+00> : vector<16x96xf32>
    %147 = tpu.matmul %145, %146, %cst_66 {dimension_numbers = #tpu.dot_dimension_numbers<[1], [0], [0], [1], [0, 0, 1, 1], [], []>} : vector<16x32xf32>, vector<32x96xf32>, vector<16x96xf32> -> vector<16x96xf32>
    %c0_67 = arith.constant 0 : index
    %c0_68 = arith.constant 0 : index
    %148 = vector.load %arg18[%c0_67, %c0_68] : memref<1x96xf32, #tpu.memory_space<vmem>>, vector<1x96xf32>
    %149 = vector.broadcast %148 : vector<1x96xf32> to vector<16x96xf32>
    %150 = arith.addf %147, %149 : vector<16x96xf32>
    %151 = vector.extract_strided_slice %150 {offsets = [0, 0], sizes = [16, 8], strides = [1, 1]} : vector<16x96xf32> to vector<16x8xf32>
    %152 = vector.extract_strided_slice %150 {offsets = [0, 32], sizes = [16, 8], strides = [1, 1]} : vector<16x96xf32> to vector<16x8xf32>
    %153 = vector.extract_strided_slice %150 {offsets = [0, 64], sizes = [16, 8], strides = [1, 1]} : vector<16x96xf32> to vector<16x8xf32>
    %154 = tpu.transpose %152, [1, 0] : vector<16x8xf32> -> vector<8x16xf32>
    %cst_69 = arith.constant dense<0.000000e+00> : vector<16x16xf32>
    %155 = tpu.matmul %151, %154, %cst_69 {dimension_numbers = #tpu.dot_dimension_numbers<[1], [0], [0], [1], [0, 0, 1, 1], [], []>} : vector<16x8xf32>, vector<8x16xf32>, vector<16x16xf32> -> vector<16x16xf32>
    %156 = arith.addf %155, %8 : vector<16x16xf32>
    %cst_70 = arith.constant dense<0xFF800000> : vector<16xf32>
    %157 = vector.multi_reduction <maximumf>, %156, %cst_70 [1] : vector<16x16xf32> to vector<16xf32>
    %158 = vector.shape_cast %157 : vector<16xf32> to vector<16x1xf32>
    %159 = vector.broadcast %158 : vector<16x1xf32> to vector<16x16xf32>
    %160 = arith.subf %156, %159 : vector<16x16xf32>
    %161 = math.exp %160 : vector<16x16xf32>
    %cst_71 = arith.constant dense<0.000000e+00> : vector<16xf32>
    %162 = vector.multi_reduction <add>, %161, %cst_71 [1] : vector<16x16xf32> to vector<16xf32>
    %163 = vector.shape_cast %162 : vector<16xf32> to vector<16x1xf32>
    %164 = tpu.reciprocal %163 {approx = true} : vector<16x1xf32> -> vector<16x1xf32>
    %165 = vector.broadcast %164 : vector<16x1xf32> to vector<16x16xf32>
    %166 = arith.mulf %161, %165 : vector<16x16xf32>
    %cst_72 = arith.constant dense<0.000000e+00> : vector<16x8xf32>
    %167 = tpu.matmul %166, %153, %cst_72 {dimension_numbers = #tpu.dot_dimension_numbers<[1], [0], [0], [1], [0, 0, 1, 1], [], []>} : vector<16x16xf32>, vector<16x8xf32>, vector<16x8xf32> -> vector<16x8xf32>
    %168 = vector.extract_strided_slice %150 {offsets = [0, 8], sizes = [16, 8], strides = [1, 1]} : vector<16x96xf32> to vector<16x8xf32>
    %169 = vector.extract_strided_slice %150 {offsets = [0, 40], sizes = [16, 8], strides = [1, 1]} : vector<16x96xf32> to vector<16x8xf32>
    %170 = vector.extract_strided_slice %150 {offsets = [0, 72], sizes = [16, 8], strides = [1, 1]} : vector<16x96xf32> to vector<16x8xf32>
    %171 = tpu.transpose %169, [1, 0] : vector<16x8xf32> -> vector<8x16xf32>
    %cst_73 = arith.constant dense<0.000000e+00> : vector<16x16xf32>
    %172 = tpu.matmul %168, %171, %cst_73 {dimension_numbers = #tpu.dot_dimension_numbers<[1], [0], [0], [1], [0, 0, 1, 1], [], []>} : vector<16x8xf32>, vector<8x16xf32>, vector<16x16xf32> -> vector<16x16xf32>
    %173 = arith.addf %172, %8 : vector<16x16xf32>
    %cst_74 = arith.constant dense<0xFF800000> : vector<16xf32>
    %174 = vector.multi_reduction <maximumf>, %173, %cst_74 [1] : vector<16x16xf32> to vector<16xf32>
    %175 = vector.shape_cast %174 : vector<16xf32> to vector<16x1xf32>
    %176 = vector.broadcast %175 : vector<16x1xf32> to vector<16x16xf32>
    %177 = arith.subf %173, %176 : vector<16x16xf32>
    %178 = math.exp %177 : vector<16x16xf32>
    %cst_75 = arith.constant dense<0.000000e+00> : vector<16xf32>
    %179 = vector.multi_reduction <add>, %178, %cst_75 [1] : vector<16x16xf32> to vector<16xf32>
    %180 = vector.shape_cast %179 : vector<16xf32> to vector<16x1xf32>
    %181 = tpu.reciprocal %180 {approx = true} : vector<16x1xf32> -> vector<16x1xf32>
    %182 = vector.broadcast %181 : vector<16x1xf32> to vector<16x16xf32>
    %183 = arith.mulf %178, %182 : vector<16x16xf32>
    %cst_76 = arith.constant dense<0.000000e+00> : vector<16x8xf32>
    %184 = tpu.matmul %183, %170, %cst_76 {dimension_numbers = #tpu.dot_dimension_numbers<[1], [0], [0], [1], [0, 0, 1, 1], [], []>} : vector<16x16xf32>, vector<16x8xf32>, vector<16x8xf32> -> vector<16x8xf32>
    %185 = vector.extract_strided_slice %150 {offsets = [0, 16], sizes = [16, 8], strides = [1, 1]} : vector<16x96xf32> to vector<16x8xf32>
    %186 = vector.extract_strided_slice %150 {offsets = [0, 48], sizes = [16, 8], strides = [1, 1]} : vector<16x96xf32> to vector<16x8xf32>
    %187 = vector.extract_strided_slice %150 {offsets = [0, 80], sizes = [16, 8], strides = [1, 1]} : vector<16x96xf32> to vector<16x8xf32>
    %188 = tpu.transpose %186, [1, 0] : vector<16x8xf32> -> vector<8x16xf32>
    %cst_77 = arith.constant dense<0.000000e+00> : vector<16x16xf32>
    %189 = tpu.matmul %185, %188, %cst_77 {dimension_numbers = #tpu.dot_dimension_numbers<[1], [0], [0], [1], [0, 0, 1, 1], [], []>} : vector<16x8xf32>, vector<8x16xf32>, vector<16x16xf32> -> vector<16x16xf32>
    %190 = arith.addf %189, %8 : vector<16x16xf32>
    %cst_78 = arith.constant dense<0xFF800000> : vector<16xf32>
    %191 = vector.multi_reduction <maximumf>, %190, %cst_78 [1] : vector<16x16xf32> to vector<16xf32>
    %192 = vector.shape_cast %191 : vector<16xf32> to vector<16x1xf32>
    %193 = vector.broadcast %192 : vector<16x1xf32> to vector<16x16xf32>
    %194 = arith.subf %190, %193 : vector<16x16xf32>
    %195 = math.exp %194 : vector<16x16xf32>
    %cst_79 = arith.constant dense<0.000000e+00> : vector<16xf32>
    %196 = vector.multi_reduction <add>, %195, %cst_79 [1] : vector<16x16xf32> to vector<16xf32>
    %197 = vector.shape_cast %196 : vector<16xf32> to vector<16x1xf32>
    %198 = tpu.reciprocal %197 {approx = true} : vector<16x1xf32> -> vector<16x1xf32>
    %199 = vector.broadcast %198 : vector<16x1xf32> to vector<16x16xf32>
    %200 = arith.mulf %195, %199 : vector<16x16xf32>
    %cst_80 = arith.constant dense<0.000000e+00> : vector<16x8xf32>
    %201 = tpu.matmul %200, %187, %cst_80 {dimension_numbers = #tpu.dot_dimension_numbers<[1], [0], [0], [1], [0, 0, 1, 1], [], []>} : vector<16x16xf32>, vector<16x8xf32>, vector<16x8xf32> -> vector<16x8xf32>
    %202 = vector.extract_strided_slice %150 {offsets = [0, 24], sizes = [16, 8], strides = [1, 1]} : vector<16x96xf32> to vector<16x8xf32>
    %203 = vector.extract_strided_slice %150 {offsets = [0, 56], sizes = [16, 8], strides = [1, 1]} : vector<16x96xf32> to vector<16x8xf32>
    %204 = vector.extract_strided_slice %150 {offsets = [0, 88], sizes = [16, 8], strides = [1, 1]} : vector<16x96xf32> to vector<16x8xf32>
    %205 = tpu.transpose %203, [1, 0] : vector<16x8xf32> -> vector<8x16xf32>
    %cst_81 = arith.constant dense<0.000000e+00> : vector<16x16xf32>
    %206 = tpu.matmul %202, %205, %cst_81 {dimension_numbers = #tpu.dot_dimension_numbers<[1], [0], [0], [1], [0, 0, 1, 1], [], []>} : vector<16x8xf32>, vector<8x16xf32>, vector<16x16xf32> -> vector<16x16xf32>
    %207 = arith.addf %206, %8 : vector<16x16xf32>
    %cst_82 = arith.constant dense<0xFF800000> : vector<16xf32>
    %208 = vector.multi_reduction <maximumf>, %207, %cst_82 [1] : vector<16x16xf32> to vector<16xf32>
    %209 = vector.shape_cast %208 : vector<16xf32> to vector<16x1xf32>
    %210 = vector.broadcast %209 : vector<16x1xf32> to vector<16x16xf32>
    %211 = arith.subf %207, %210 : vector<16x16xf32>
    %212 = math.exp %211 : vector<16x16xf32>
    %cst_83 = arith.constant dense<0.000000e+00> : vector<16xf32>
    %213 = vector.multi_reduction <add>, %212, %cst_83 [1] : vector<16x16xf32> to vector<16xf32>
    %214 = vector.shape_cast %213 : vector<16xf32> to vector<16x1xf32>
    %215 = tpu.reciprocal %214 {approx = true} : vector<16x1xf32> -> vector<16x1xf32>
    %216 = vector.broadcast %215 : vector<16x1xf32> to vector<16x16xf32>
    %217 = arith.mulf %212, %216 : vector<16x16xf32>
    %cst_84 = arith.constant dense<0.000000e+00> : vector<16x8xf32>
    %218 = tpu.matmul %217, %204, %cst_84 {dimension_numbers = #tpu.dot_dimension_numbers<[1], [0], [0], [1], [0, 0, 1, 1], [], []>} : vector<16x16xf32>, vector<16x8xf32>, vector<16x8xf32> -> vector<16x8xf32>
    %219 = tpu.concatenate %167, %184, %201, %218 in 1 : vector<16x8xf32>, vector<16x8xf32>, vector<16x8xf32>, vector<16x8xf32> -> vector<16x32xf32>
    %c0_85 = arith.constant 0 : index
    %c0_86 = arith.constant 0 : index
    %220 = vector.load %arg19[%c0_85, %c0_86] : memref<32x32xf32, #tpu.memory_space<vmem>>, vector<32x32xf32>
    %cst_87 = arith.constant dense<0.000000e+00> : vector<16x32xf32>
    %221 = tpu.matmul %219, %220, %cst_87 {dimension_numbers = #tpu.dot_dimension_numbers<[1], [0], [0], [1], [0, 0, 1, 1], [], []>} : vector<16x32xf32>, vector<32x32xf32>, vector<16x32xf32> -> vector<16x32xf32>
    %c0_88 = arith.constant 0 : index
    %c0_89 = arith.constant 0 : index
    %222 = vector.load %arg20[%c0_88, %c0_89] : memref<1x32xf32, #tpu.memory_space<vmem>>, vector<1x32xf32>
    %223 = vector.broadcast %222 : vector<1x32xf32> to vector<16x32xf32>
    %224 = arith.addf %221, %223 : vector<16x32xf32>
    %225 = arith.addf %145, %224 : vector<16x32xf32>
    %c0_90 = arith.constant 0 : index
    %c0_91 = arith.constant 0 : index
    %226 = vector.load %arg21[%c0_90, %c0_91] : memref<1x32xf32, #tpu.memory_space<vmem>>, vector<1x32xf32>
    %c0_92 = arith.constant 0 : index
    %c0_93 = arith.constant 0 : index
    %227 = vector.load %arg22[%c0_92, %c0_93] : memref<1x32xf32, #tpu.memory_space<vmem>>, vector<1x32xf32>
    %cst_94 = arith.constant dense<0.000000e+00> : vector<16xf32>
    %228 = vector.multi_reduction <add>, %225, %cst_94 [1] : vector<16x32xf32> to vector<16xf32>
    %229 = vector.shape_cast %228 : vector<16xf32> to vector<16x1xf32>
    %cst_95 = arith.constant 3.200000e+01 : f32
    %230 = vector.broadcast %cst_95 : f32 to vector<16x1xf32>
    %231 = arith.divf %229, %230 : vector<16x1xf32>
    %232 = vector.broadcast %231 : vector<16x1xf32> to vector<16x32xf32>
    %233 = arith.subf %225, %232 : vector<16x32xf32>
    %234 = arith.mulf %233, %233 : vector<16x32xf32>
    %cst_96 = arith.constant dense<0.000000e+00> : vector<16xf32>
    %235 = vector.multi_reduction <add>, %234, %cst_96 [1] : vector<16x32xf32> to vector<16xf32>
    %236 = vector.shape_cast %235 : vector<16xf32> to vector<16x1xf32>
    %cst_97 = arith.constant 3.200000e+01 : f32
    %237 = vector.broadcast %cst_97 : f32 to vector<16x1xf32>
    %238 = arith.divf %236, %237 : vector<16x1xf32>
    %cst_98 = arith.constant 9.99999974E-6 : f32
    %239 = vector.broadcast %cst_98 : f32 to vector<16x1xf32>
    %240 = arith.addf %238, %239 : vector<16x1xf32>
    %241 = math.rsqrt %240 : vector<16x1xf32>
    %242 = vector.broadcast %241 : vector<16x1xf32> to vector<16x32xf32>
    %243 = arith.mulf %233, %242 : vector<16x32xf32>
    %244 = vector.broadcast %226 : vector<1x32xf32> to vector<16x32xf32>
    %245 = arith.mulf %243, %244 : vector<16x32xf32>
    %246 = vector.broadcast %227 : vector<1x32xf32> to vector<16x32xf32>
    %247 = arith.addf %245, %246 : vector<16x32xf32>
    %c0_99 = arith.constant 0 : index
    %c0_100 = arith.constant 0 : index
    %248 = vector.load %arg23[%c0_99, %c0_100] : memref<32x64xf32, #tpu.memory_space<vmem>>, vector<32x64xf32>
    %cst_101 = arith.constant dense<0.000000e+00> : vector<16x64xf32>
    %249 = tpu.matmul %247, %248, %cst_101 {dimension_numbers = #tpu.dot_dimension_numbers<[1], [0], [0], [1], [0, 0, 1, 1], [], []>} : vector<16x32xf32>, vector<32x64xf32>, vector<16x64xf32> -> vector<16x64xf32>
    %c0_102 = arith.constant 0 : index
    %c0_103 = arith.constant 0 : index
    %250 = vector.load %arg24[%c0_102, %c0_103] : memref<1x64xf32, #tpu.memory_space<vmem>>, vector<1x64xf32>
    %251 = vector.broadcast %250 : vector<1x64xf32> to vector<16x64xf32>
    %252 = arith.addf %249, %251 : vector<16x64xf32>
    %cst_104 = arith.constant 0.000000e+00 : f32
    %253 = vector.broadcast %cst_104 : f32 to vector<16x64xf32>
    %254 = arith.maximumf %252, %253 : vector<16x64xf32>
    %c0_105 = arith.constant 0 : index
    %c0_106 = arith.constant 0 : index
    %255 = vector.load %arg25[%c0_105, %c0_106] : memref<64x32xf32, #tpu.memory_space<vmem>>, vector<64x32xf32>
    %cst_107 = arith.constant dense<0.000000e+00> : vector<16x32xf32>
    %256 = tpu.matmul %254, %255, %cst_107 {dimension_numbers = #tpu.dot_dimension_numbers<[1], [0], [0], [1], [0, 0, 1, 1], [], []>} : vector<16x64xf32>, vector<64x32xf32>, vector<16x32xf32> -> vector<16x32xf32>
    %c0_108 = arith.constant 0 : index
    %c0_109 = arith.constant 0 : index
    %257 = vector.load %arg26[%c0_108, %c0_109] : memref<1x32xf32, #tpu.memory_space<vmem>>, vector<1x32xf32>
    %258 = vector.broadcast %257 : vector<1x32xf32> to vector<16x32xf32>
    %259 = arith.addf %256, %258 : vector<16x32xf32>
    %260 = arith.addf %247, %259 : vector<16x32xf32>
    %c0_110 = arith.constant 0 : index
    %c0_111 = arith.constant 0 : index
    %261 = vector.load %arg27[%c0_110, %c0_111] : memref<1x32xf32, #tpu.memory_space<vmem>>, vector<1x32xf32>
    %c0_112 = arith.constant 0 : index
    %c0_113 = arith.constant 0 : index
    %262 = vector.load %arg28[%c0_112, %c0_113] : memref<1x32xf32, #tpu.memory_space<vmem>>, vector<1x32xf32>
    %cst_114 = arith.constant dense<0.000000e+00> : vector<16xf32>
    %263 = vector.multi_reduction <add>, %260, %cst_114 [1] : vector<16x32xf32> to vector<16xf32>
    %264 = vector.shape_cast %263 : vector<16xf32> to vector<16x1xf32>
    %cst_115 = arith.constant 3.200000e+01 : f32
    %265 = vector.broadcast %cst_115 : f32 to vector<16x1xf32>
    %266 = arith.divf %264, %265 : vector<16x1xf32>
    %267 = vector.broadcast %266 : vector<16x1xf32> to vector<16x32xf32>
    %268 = arith.subf %260, %267 : vector<16x32xf32>
    %269 = arith.mulf %268, %268 : vector<16x32xf32>
    %cst_116 = arith.constant dense<0.000000e+00> : vector<16xf32>
    %270 = vector.multi_reduction <add>, %269, %cst_116 [1] : vector<16x32xf32> to vector<16xf32>
    %271 = vector.shape_cast %270 : vector<16xf32> to vector<16x1xf32>
    %cst_117 = arith.constant 3.200000e+01 : f32
    %272 = vector.broadcast %cst_117 : f32 to vector<16x1xf32>
    %273 = arith.divf %271, %272 : vector<16x1xf32>
    %cst_118 = arith.constant 9.99999974E-6 : f32
    %274 = vector.broadcast %cst_118 : f32 to vector<16x1xf32>
    %275 = arith.addf %273, %274 : vector<16x1xf32>
    %276 = math.rsqrt %275 : vector<16x1xf32>
    %277 = vector.broadcast %276 : vector<16x1xf32> to vector<16x32xf32>
    %278 = arith.mulf %268, %277 : vector<16x32xf32>
    %279 = vector.broadcast %261 : vector<1x32xf32> to vector<16x32xf32>
    %280 = arith.mulf %278, %279 : vector<16x32xf32>
    %281 = vector.broadcast %262 : vector<1x32xf32> to vector<16x32xf32>
    %282 = arith.addf %280, %281 : vector<16x32xf32>
    %c0_119 = arith.constant 0 : index
    %c0_120 = arith.constant 0 : index
    %283 = vector.load %arg29[%c0_119, %c0_120] : memref<32x16xf32, #tpu.memory_space<vmem>>, vector<32x16xf32>
    %cst_121 = arith.constant dense<0.000000e+00> : vector<16x16xf32>
    %284 = tpu.matmul %282, %283, %cst_121 {dimension_numbers = #tpu.dot_dimension_numbers<[1], [0], [0], [1], [0, 0, 1, 1], [], []>} : vector<16x32xf32>, vector<32x16xf32>, vector<16x16xf32> -> vector<16x16xf32>
    %c0_122 = arith.constant 0 : index
    %c0_123 = arith.constant 0 : index
    %285 = vector.load %arg30[%c0_122, %c0_123] : memref<1x16xf32, #tpu.memory_space<vmem>>, vector<1x16xf32>
    %286 = vector.broadcast %285 : vector<1x16xf32> to vector<16x16xf32>
    %287 = arith.addf %284, %286 : vector<16x16xf32>
    %cst_124 = arith.constant 0.000000e+00 : f32
    %288 = vector.broadcast %cst_124 : f32 to vector<16x16xf32>
    %289 = arith.maximumf %287, %288 : vector<16x16xf32>
    %c0_125 = arith.constant 0 : index
    %c0_126 = arith.constant 0 : index
    %290 = vector.load %arg31[%c0_125, %c0_126] : memref<16x128xf32, #tpu.memory_space<vmem>>, vector<16x128xf32>
    %cst_127 = arith.constant dense<0.000000e+00> : vector<16x128xf32>
    %291 = tpu.matmul %289, %290, %cst_127 {dimension_numbers = #tpu.dot_dimension_numbers<[1], [0], [0], [1], [0, 0, 1, 1], [], []>} : vector<16x16xf32>, vector<16x128xf32>, vector<16x128xf32> -> vector<16x128xf32>
    %c0_128 = arith.constant 0 : index
    %c0_129 = arith.constant 0 : index
    %292 = vector.load %arg32[%c0_128, %c0_129] : memref<1x128xf32, #tpu.memory_space<vmem>>, vector<1x128xf32>
    %293 = vector.broadcast %292 : vector<1x128xf32> to vector<16x128xf32>
    %294 = arith.addf %291, %293 : vector<16x128xf32>
    %c0_130 = arith.constant 0 : index
    %c0_131 = arith.constant 0 : index
    %295 = vector.load %arg33[%c0_130, %c0_131] : memref<16x128xf32, #tpu.memory_space<vmem>>, vector<16x128xf32>
    tpu.vector_store %arg33[%c0_130, %c0_131], %294 {strides = array<i32>} : memref<16x128xf32, #tpu.memory_space<vmem>>, vector<16x128xf32>,
    return
  }
}

</mosaic_0001>

<llo_original>
// kernel: tpu_custom_call.1
$region0: #{tpu_custom_call.1}
  #allocation0 [shape = 'u32[]', space=smem, size = 0x4, offset = 0x4, fixed_abs, tag = 'smem constant byte address 0x4 - core index']
  #allocation1 [shape = 'u32[72,128]{1,0:T(1,128)}', space=vmem, size = 0x9000, scoped, tag = 'internal scratch']
  %s0 = inlined_call_operand.smem [shape: u32[34], index: -1, kind: input, shape index: {}]
  %s1 = sld [smem:[%s0]]
  %s2 = scalar_lea.smem %s0, 1
  %s3 = sld [smem:[%s2]]
  %s4 = scalar_lea.smem %s0, 2
  %s5 = sld [smem:[%s4]]
  %s6 = scalar_lea.smem %s0, 3
  %s7 = sld [smem:[%s6]]
  %s8 = scalar_lea.smem %s0, 4
  %s9 = sld [smem:[%s8]]
  %s10 = scalar_lea.smem %s0, 5
  %s11 = sld [smem:[%s10]]
  %s12 = scalar_lea.smem %s0, 6
  %s13 = sld [smem:[%s12]]
  %s14 = scalar_lea.smem %s0, 7
  %s15 = sld [smem:[%s14]]
  %s16 = scalar_lea.smem %s0, 8
  %s17 = sld [smem:[%s16]]
  %s18 = scalar_lea.smem %s0, 9
  %s19 = sld [smem:[%s18]]
  %s20 = scalar_lea.smem %s0, 10
  %s21 = sld [smem:[%s20]]
  %s22 = scalar_lea.smem %s0, 11
  %s23 = sld [smem:[%s22]]
  %s24 = scalar_lea.smem %s0, 12
  %s25 = sld [smem:[%s24]]
  %s26 = scalar_lea.smem %s0, 13
  %s27 = sld [smem:[%s26]]
  %s28 = scalar_lea.smem %s0, 14
  %s29 = sld [smem:[%s28]]
  %s30 = scalar_lea.smem %s0, 15
  %s31 = sld [smem:[%s30]]
  %s32 = scalar_lea.smem %s0, 16
  %s33 = sld [smem:[%s32]]
  %s34 = scalar_lea.smem %s0, 17
  %s35 = sld [smem:[%s34]]
  %s36 = scalar_lea.smem %s0, 18
  %s37 = sld [smem:[%s36]]
  %s38 = scalar_lea.smem %s0, 19
  %s39 = sld [smem:[%s38]]
  %s40 = scalar_lea.smem %s0, 20
  %s41 = sld [smem:[%s40]]
  %s42 = scalar_lea.smem %s0, 21
  %s43 = sld [smem:[%s42]]
  %s44 = scalar_lea.smem %s0, 22
  %s45 = sld [smem:[%s44]]
  %s46 = scalar_lea.smem %s0, 23
  %s47 = sld [smem:[%s46]]
  %s48 = scalar_lea.smem %s0, 24
  %s49 = sld [smem:[%s48]]
  %s50 = scalar_lea.smem %s0, 25
  %s51 = sld [smem:[%s50]]
  %s52 = scalar_lea.smem %s0, 26
  %s53 = sld [smem:[%s52]]
  %s54 = scalar_lea.smem %s0, 27
  %s55 = sld [smem:[%s54]]
  %s56 = scalar_lea.smem %s0, 28
  %s57 = sld [smem:[%s56]]
  %s58 = scalar_lea.smem %s0, 29
  %s59 = sld [smem:[%s58]]
  %s60 = scalar_lea.smem %s0, 30
  %s61 = sld [smem:[%s60]]
  %s62 = scalar_lea.smem %s0, 31
  %s63 = sld [smem:[%s62]]
  %s64 = scalar_lea.smem %s0, 32
  %s65 = sld [smem:[%s64]]
  %s66 = scalar_lea.smem %s0, 33
  %s67 = sld [smem:[%s66]]
  %s68 = sld [smem:[#allocation0]]
  $region178: #{tpu_custom_call.1} parent=0
    _
  %s70 = ssub.s32 1, %s68
  %s71 = scalar_select 0, %s70, %s68
  $region1: #{tpu_custom_call.1} parent=0
    #allocation2 [shape = 'u8[8192]{0}', space=vmem, size = 0x2000, scoped, tag = 'input window, operand 2, single buffered']
    #allocation3 [shape = 's32[1]{0}', space=sflag, size = 0x4, scoped, tag = 'scoped memory for tpu_custom_call.1']
    #allocation4 [shape = 's32[1]{0}', space=sflag, size = 0x4, scoped, tag = 'scoped memory for tpu_custom_call.1']
    #allocation5 [shape = 'u8[2048]{0}', space=vmem, size = 0x800, scoped, tag = 'input window, operand 3, single buffered']
    #allocation6 [shape = 's32[1]{0}', space=sflag, size = 0x4, scoped, tag = 'scoped memory for tpu_custom_call.1']
    #allocation7 [shape = 'u8[512]{0}', space=vmem, size = 0x400, scoped, tag = 'input window, operand 9, single buffered']
    #allocation8 [shape = 'u8[512]{0}', space=vmem, size = 0x400, scoped, tag = 'input window, operand 10, single buffered']
    #allocation9 [shape = 's32[1]{0}', space=sflag, size = 0x4, scoped, tag = 'scoped memory for tpu_custom_call.1']
    #allocation10 [shape = 'u8[512]{0}', space=vmem, size = 0x400, scoped, tag = 'input window, operand 12, single buffered']
    #allocation11 [shape = 'u8[512]{0}', space=vmem, size = 0x400, scoped, tag = 'input window, operand 14, single buffered']
    #allocation12 [shape = 's32[1]{0}', space=sflag, size = 0x4, scoped, tag = 'scoped memory for tpu_custom_call.1']
    #allocation13 [shape = 'u8[512]{0}', space=vmem, size = 0x400, scoped, tag = 'input window, operand 15, single buffered']
    #allocation14 [shape = 'u8[512]{0}', space=vmem, size = 0x400, scoped, tag = 'input window, operand 16, single buffered']
    #allocation15 [shape = 's32[1]{0}', space=sflag, size = 0x4, scoped, tag = 'scoped memory for tpu_custom_call.1']
    #allocation16 [shape = 'u8[16384]{0}', space=vmem, size = 0x4000, scoped, tag = 'input window, operand 23, single buffered']
    #allocation17 [shape = 'u8[8192]{0}', space=vmem, size = 0x2000, scoped, tag = 'output window, operand 0, single buffered']
    %72 = vsyncpa [#allocation3], 0
    %73 = vsyncpa [#allocation6], 0
    %74 = vsyncpa [#allocation9], 0
    %75 = vsyncpa [#allocation12], 0
    %76 = vsyncpa [#allocation15], 0
    %77 = vsyncpa [#allocation4], 0
    // Predicated region
    $region2: #{tpu_custom_call.1} parent=1 // pred_check
      _
    $region3: #{tpu_custom_call.1} parent=1 // pred_check_branch
      %79 = sbr.rel (0) target = $region5
    $region4: #{tpu_custom_call.1} parent=1 // pred_region
      _
    $region5: #{tpu_custom_call.1} parent=1 // pred_fallthru
      _
    // Predicated region
    $region6: #{tpu_custom_call.1} parent=1 // pred_check
      _
    $region7: #{tpu_custom_call.1} parent=1 // pred_check_branch
      %81 = sbr.rel (0) target = $region9
    $region8: #{tpu_custom_call.1} parent=1 // pred_region
      _
    $region9: #{tpu_custom_call.1} parent=1 // pred_fallthru
      _
    // Predicated region
    $region10: #{tpu_custom_call.1} parent=1 // pred_check
      _
    $region11: #{tpu_custom_call.1} parent=1 // pred_check_branch
      %83 = sbr.rel (0) target = $region13
    $region12: #{tpu_custom_call.1} parent=1 // pred_region
      %85 = vsyncadd [#allocation3], 0
      %s86 = sshll.u32 %s5, 4
      %s87 = int_to_ptr.hbm [resolvable:$true] %s86
      %s88 = sshll.u32 [#allocation2], 4
      %s89 = int_to_ptr.vmem [resolvable:$true] %s88
      %94 = dma.hbm_to_vmem [thread:$0]  %s87, 256, %s89, [#allocation3], 128, 128, 8
    $region13: #{tpu_custom_call.1} parent=1 // pred_fallthru
      _
    // Predicated region
    $region14: #{tpu_custom_call.1} parent=1 // pred_check
      _
    $region15: #{tpu_custom_call.1} parent=1 // pred_check_branch
      %96 = sbr.rel (0) target = $region17
    $region16: #{tpu_custom_call.1} parent=1 // pred_region
      %98 = vsyncadd [#allocation6], 0
      %s100 = sshll.u32 %s7, 4
      %s101 = int_to_ptr.hbm [resolvable:$true] %s100
      %s102 = sshll.u32 [#allocation5], 4
      %s103 = int_to_ptr.vmem [resolvable:$true] %s102
      %105 = dma.hbm_to_vmem [thread:$0]  %s101, 64, %s103, [#allocation6]
    $region17: #{tpu_custom_call.1} parent=1 // pred_fallthru
      _
    // Predicated region
    $region18: #{tpu_custom_call.1} parent=1 // pred_check
      _
    $region19: #{tpu_custom_call.1} parent=1 // pred_check_branch
      %107 = sbr.rel (0) target = $region21
    $region20: #{tpu_custom_call.1} parent=1 // pred_region
      _
    $region21: #{tpu_custom_call.1} parent=1 // pred_fallthru
      _
    // Predicated region
    $region22: #{tpu_custom_call.1} parent=1 // pred_check
      _
    $region23: #{tpu_custom_call.1} parent=1 // pred_check_branch
      %109 = sbr.rel (0) target = $region25
    $region24: #{tpu_custom_call.1} parent=1 // pred_region
      _
    $region25: #{tpu_custom_call.1} parent=1 // pred_fallthru
      _
    // Predicated region
    $region26: #{tpu_custom_call.1} parent=1 // pred_check
      _
    $region27: #{tpu_custom_call.1} parent=1 // pred_check_branch
      %111 = sbr.rel (0) target = $region29
    $region28: #{tpu_custom_call.1} parent=1 // pred_region
      _
    $region29: #{tpu_custom_call.1} parent=1 // pred_fallthru
      _
    // Predicated region
    $region30: #{tpu_custom_call.1} parent=1 // pred_check
      _
    $region31: #{tpu_custom_call.1} parent=1 // pred_check_branch
      %113 = sbr.rel (0) target = $region33
    $region32: #{tpu_custom_call.1} parent=1 // pred_region
      _
    $region33: #{tpu_custom_call.1} parent=1 // pred_fallthru
      _
    // Predicated region
    $region34: #{tpu_custom_call.1} parent=1 // pred_check
      _
    $region35: #{tpu_custom_call.1} parent=1 // pred_check_branch
      %115 = sbr.rel (0) target = $region37
    $region36: #{tpu_custom_call.1} parent=1 // pred_region
      _
    $region37: #{tpu_custom_call.1} parent=1 // pred_fallthru
      _
    // Predicated region
    $region38: #{tpu_custom_call.1} parent=1 // pred_check
      _
    $region39: #{tpu_custom_call.1} parent=1 // pred_check_branch
      %117 = sbr.rel (0) target = $region41
    $region40: #{tpu_custom_call.1} parent=1 // pred_region
      %119 = vsyncadd [#allocation6], 0
      %s121 = sshll.u32 %s19, 4
      %s122 = int_to_ptr.hbm [resolvable:$true] %s121
      %s123 = sshll.u32 [#allocation7], 4
      %s124 = int_to_ptr.vmem [resolvable:$true] %s123
      %126 = dma.hbm_to_vmem [thread:$0]  %s122, 16, %s124, [#allocation6]
    $region41: #{tpu_custom_call.1} parent=1 // pred_fallthru
      _
    // Predicated region
    $region42: #{tpu_custom_call.1} parent=1 // pred_check
      _
    $region43: #{tpu_custom_call.1} parent=1 // pred_check_branch
      %128 = sbr.rel (0) target = $region45
    $region44: #{tpu_custom_call.1} parent=1 // pred_region
      %130 = vsyncadd [#allocation9], 0
      %s132 = sshll.u32 %s21, 4
      %s133 = int_to_ptr.hbm [resolvable:$true] %s132
      %s134 = sshll.u32 [#allocation8], 4
      %s135 = int_to_ptr.vmem [resolvable:$true] %s134
      %137 = dma.hbm_to_vmem [thread:$0]  %s133, 16, %s135, [#allocation9]
    $region45: #{tpu_custom_call.1} parent=1 // pred_fallthru
      _
    // Predicated region
    $region46: #{tpu_custom_call.1} parent=1 // pred_check
      _
    $region47: #{tpu_custom_call.1} parent=1 // pred_check_branch
      %139 = sbr.rel (0) target = $region49
    $region48: #{tpu_custom_call.1} parent=1 // pred_region
      _
    $region49: #{tpu_custom_call.1} parent=1 // pred_fallthru
      _
    // Predicated region
    $region50: #{tpu_custom_call.1} parent=1 // pred_check
      _
    $region51: #{tpu_custom_call.1} parent=1 // pred_check_branch
      %141 = sbr.rel (0) target = $region53
    $region52: #{tpu_custom_call.1} parent=1 // pred_region
      %143 = vsyncadd [#allocation9], 0
      %s145 = sshll.u32 %s25, 4
      %s146 = int_to_ptr.hbm [resolvable:$true] %s145
      %s147 = sshll.u32 [#allocation10], 4
      %s148 = int_to_ptr.vmem [resolvable:$true] %s147
      %150 = dma.hbm_to_vmem [thread:$0]  %s146, 16, %s148, [#allocation9]
    $region53: #{tpu_custom_call.1} parent=1 // pred_fallthru
      _
    // Predicated region
    $region54: #{tpu_custom_call.1} parent=1 // pred_check
      _
    $region55: #{tpu_custom_call.1} parent=1 // pred_check_branch
      %152 = sbr.rel (0) target = $region57
    $region56: #{tpu_custom_call.1} parent=1 // pred_region
      _
    $region57: #{tpu_custom_call.1} parent=1 // pred_fallthru
      _
    // Predicated region
    $region58: #{tpu_custom_call.1} parent=1 // pred_check
      _
    $region59: #{tpu_custom_call.1} parent=1 // pred_check_branch
      %154 = sbr.rel (0) target = $region61
    $region60: #{tpu_custom_call.1} parent=1 // pred_region
      %156 = vsyncadd [#allocation12], 0
      %s158 = sshll.u32 %s29, 4
      %s159 = int_to_ptr.hbm [resolvable:$true] %s158
      %s160 = sshll.u32 [#allocation11], 4
      %s161 = int_to_ptr.vmem [resolvable:$true] %s160
      %163 = dma.hbm_to_vmem [thread:$0]  %s159, 16, %s161, [#allocation12]
    $region61: #{tpu_custom_call.1} parent=1 // pred_fallthru
      _
    // Predicated region
    $region62: #{tpu_custom_call.1} parent=1 // pred_check
      _
    $region63: #{tpu_custom_call.1} parent=1 // pred_check_branch
      %165 = sbr.rel (0) target = $region65
    $region64: #{tpu_custom_call.1} parent=1 // pred_region
      %167 = vsyncadd [#allocation12], 0
      %s169 = sshll.u32 %s31, 4
      %s170 = int_to_ptr.hbm [resolvable:$true] %s169
      %s171 = sshll.u32 [#allocation13], 4
      %s172 = int_to_ptr.vmem [resolvable:$true] %s171
      %174 = dma.hbm_to_vmem [thread:$0]  %s170, 16, %s172, [#allocation12]
    $region65: #{tpu_custom_call.1} parent=1 // pred_fallthru
      _
    // Predicated region
    $region66: #{tpu_custom_call.1} parent=1 // pred_check
      _
    $region67: #{tpu_custom_call.1} parent=1 // pred_check_branch
      %176 = sbr.rel (0) target = $region69
    $region68: #{tpu_custom_call.1} parent=1 // pred_region
      %178 = vsyncadd [#allocation15], 0
      %s180 = sshll.u32 %s33, 4
      %s181 = int_to_ptr.hbm [resolvable:$true] %s180
      %s182 = sshll.u32 [#allocation14], 4
      %s183 = int_to_ptr.vmem [resolvable:$true] %s182
      %185 = dma.hbm_to_vmem [thread:$0]  %s181, 16, %s183, [#allocation15]
    $region69: #{tpu_custom_call.1} parent=1 // pred_fallthru
      _
    // Predicated region
    $region70: #{tpu_custom_call.1} parent=1 // pred_check
      _
    $region71: #{tpu_custom_call.1} parent=1 // pred_check_branch
      %187 = sbr.rel (0) target = $region73
    $region72: #{tpu_custom_call.1} parent=1 // pred_region
      _
    $region73: #{tpu_custom_call.1} parent=1 // pred_fallthru
      _
    // Predicated region
    $region74: #{tpu_custom_call.1} parent=1 // pred_check
      _
    $region75: #{tpu_custom_call.1} parent=1 // pred_check_branch
      %189 = sbr.rel (0) target = $region77
    $region76: #{tpu_custom_call.1} parent=1 // pred_region
      _
    $region77: #{tpu_custom_call.1} parent=1 // pred_fallthru
      _
    // Predicated region
    $region78: #{tpu_custom_call.1} parent=1 // pred_check
      _
    $region79: #{tpu_custom_call.1} parent=1 // pred_check_branch
      %191 = sbr.rel (0) target = $region81
    $region80: #{tpu_custom_call.1} parent=1 // pred_region
      _
    $region81: #{tpu_custom_call.1} parent=1 // pred_fallthru
      _
    // Predicated region
    $region82: #{tpu_custom_call.1} parent=1 // pred_check
      _
    $region83: #{tpu_custom_call.1} parent=1 // pred_check_branch
      %193 = sbr.rel (0) target = $region85
    $region84: #{tpu_custom_call.1} parent=1 // pred_region
      _
    $region85: #{tpu_custom_call.1} parent=1 // pred_fallthru
      _
    // Predicated region
    $region86: #{tpu_custom_call.1} parent=1 // pred_check
      _
    $region87: #{tpu_custom_call.1} parent=1 // pred_check_branch
      %195 = sbr.rel (0) target = $region89
    $region88: #{tpu_custom_call.1} parent=1 // pred_region
      _
    $region89: #{tpu_custom_call.1} parent=1 // pred_fallthru
      _
    // Predicated region
    $region90: #{tpu_custom_call.1} parent=1 // pred_check
      _
    $region91: #{tpu_custom_call.1} parent=1 // pred_check_branch
      %197 = sbr.rel (0) target = $region93
    $region92: #{tpu_custom_call.1} parent=1 // pred_region
      _
    $region93: #{tpu_custom_call.1} parent=1 // pred_fallthru
      _
    // Predicated region
    $region94: #{tpu_custom_call.1} parent=1 // pred_check
      _
    $region95: #{tpu_custom_call.1} parent=1 // pred_check_branch
      %199 = sbr.rel (0) target = $region97
    $region96: #{tpu_custom_call.1} parent=1 // pred_region
      %201 = vsyncadd [#allocation15], 0
      %s202 = sshll.u32 %s47, 4
      %s203 = int_to_ptr.hbm [resolvable:$true] %s202
      %s204 = sshll.u32 [#allocation16], 4
      %s205 = int_to_ptr.vmem [resolvable:$true] %s204
      %210 = dma.hbm_to_vmem [thread:$0]  %s203, 512, %s205, [#allocation15], 128, 128, 8
    $region97: #{tpu_custom_call.1} parent=1 // pred_fallthru
      _
    // Predicated region
    $region98: #{tpu_custom_call.1} parent=1 // pred_check
      _
    $region99: #{tpu_custom_call.1} parent=1 // pred_check_branch
      %212 = sbr.rel (0) target = $region101
    $region100: #{tpu_custom_call.1} parent=1 // pred_region
      _
    $region101: #{tpu_custom_call.1} parent=1 // pred_fallthru
      _
    // Predicated region
    $region102: #{tpu_custom_call.1} parent=1 // pred_check
      _
    $region103: #{tpu_custom_call.1} parent=1 // pred_check_branch
      %214 = sbr.rel (0) target = $region105
    $region104: #{tpu_custom_call.1} parent=1 // pred_region
      _
    $region105: #{tpu_custom_call.1} parent=1 // pred_fallthru
      _
    // Predicated region
    $region106: #{tpu_custom_call.1} parent=1 // pred_check
      _
    $region107: #{tpu_custom_call.1} parent=1 // pred_check_branch
      %216 = sbr.rel (0) target = $region109
    $region108: #{tpu_custom_call.1} parent=1 // pred_region
      _
    $region109: #{tpu_custom_call.1} parent=1 // pred_fallthru
      _
    // Predicated region
    $region110: #{tpu_custom_call.1} parent=1 // pred_check
      _
    $region111: #{tpu_custom_call.1} parent=1 // pred_check_branch
      %218 = sbr.rel (0) target = $region113
    $region112: #{tpu_custom_call.1} parent=1 // pred_region
      _
    $region113: #{tpu_custom_call.1} parent=1 // pred_fallthru
      _
    // Predicated region
    $region114: #{tpu_custom_call.1} parent=1 // pred_check
      _
    $region115: #{tpu_custom_call.1} parent=1 // pred_check_branch
      %220 = sbr.rel (0) target = $region117
    $region116: #{tpu_custom_call.1} parent=1 // pred_region
      _
    $region117: #{tpu_custom_call.1} parent=1 // pred_fallthru
      _
    // Predicated region
    $region118: #{tpu_custom_call.1} parent=1 // pred_check
      _
    $region119: #{tpu_custom_call.1} parent=1 // pred_check_branch
      %222 = sbr.rel (0) target = $region121
    $region120: #{tpu_custom_call.1} parent=1 // pred_region
      _
    $region121: #{tpu_custom_call.1} parent=1 // pred_fallthru
      _
    // Predicated region
    $region122: #{tpu_custom_call.1} parent=1 // pred_check
      _
    $region123: #{tpu_custom_call.1} parent=1 // pred_check_branch
      %224 = sbr.rel (0) target = $region125
    $region124: #{tpu_custom_call.1} parent=1 // pred_region
      _
    $region125: #{tpu_custom_call.1} parent=1 // pred_fallthru
      _
    // Predicated region
    $region126: #{tpu_custom_call.1} parent=1 // pred_check
      _
    $region127: #{tpu_custom_call.1} parent=1 // pred_check_branch
      %226 = sbr.rel (0) target = $region129
    $region128: #{tpu_custom_call.1} parent=1 // pred_region
      _
    $region129: #{tpu_custom_call.1} parent=1 // pred_fallthru
      _
    // Predicated region
    $region130: #{tpu_custom_call.1} parent=1 // pred_check
      _
    $region131: #{tpu_custom_call.1} parent=1 // pred_check_branch
      %228 = sbr.rel (0) target = $region133
    $region132: #{tpu_custom_call.1} parent=1 // pred_region
      _
    $region133: #{tpu_custom_call.1} parent=1 // pred_fallthru
      _
    // Predicated region
    $region134: #{tpu_custom_call.1} parent=1 // pred_check
      _
    $region135: #{tpu_custom_call.1} parent=1 // pred_check_branch
      %230 = sbr.rel (0) target = $region137
    $region136: #{tpu_custom_call.1} parent=1 // pred_region
      %232 = dma.done [#allocation3], 256
    $region137: #{tpu_custom_call.1} parent=1 // pred_fallthru
      _
    // Predicated region
    $region138: #{tpu_custom_call.1} parent=1 // pred_check
      _
    $region139: #{tpu_custom_call.1} parent=1 // pred_check_branch
      %234 = sbr.rel (0) target = $region141
    $region140: #{tpu_custom_call.1} parent=1 // pred_region
      %236 = dma.done [#allocation6], 64
    $region141: #{tpu_custom_call.1} parent=1 // pred_fallthru
      _
    // Predicated region
    $region142: #{tpu_custom_call.1} parent=1 // pred_check
      _
    $region143: #{tpu_custom_call.1} parent=1 // pred_check_branch
      %238 = sbr.rel (0) target = $region145
    $region144: #{tpu_custom_call.1} parent=1 // pred_region
      %240 = dma.done [#allocation6], 16
    $region145: #{tpu_custom_call.1} parent=1 // pred_fallthru
      _
    // Predicated region
    $region146: #{tpu_custom_call.1} parent=1 // pred_check
      _
    $region147: #{tpu_custom_call.1} parent=1 // pred_check_branch
      %242 = sbr.rel (0) target = $region149
    $region148: #{tpu_custom_call.1} parent=1 // pred_region
      %244 = dma.done [#allocation9], 16
    $region149: #{tpu_custom_call.1} parent=1 // pred_fallthru
      _
    // Predicated region
    $region150: #{tpu_custom_call.1} parent=1 // pred_check
      _
    $region151: #{tpu_custom_call.1} parent=1 // pred_check_branch
      %246 = sbr.rel (0) target = $region153
    $region152: #{tpu_custom_call.1} parent=1 // pred_region
      %248 = dma.done [#allocation9], 16
    $region153: #{tpu_custom_call.1} parent=1 // pred_fallthru
      _
    // Predicated region
    $region154: #{tpu_custom_call.1} parent=1 // pred_check
      _
    $region155: #{tpu_custom_call.1} parent=1 // pred_check_branch
      %250 = sbr.rel (0) target = $region157
    $region156: #{tpu_custom_call.1} parent=1 // pred_region
      %252 = dma.done [#allocation12], 16
    $region157: #{tpu_custom_call.1} parent=1 // pred_fallthru
      _
    // Predicated region
    $region158: #{tpu_custom_call.1} parent=1 // pred_check
      _
    $region159: #{tpu_custom_call.1} parent=1 // pred_check_branch
      %254 = sbr.rel (0) target = $region161
    $region160: #{tpu_custom_call.1} parent=1 // pred_region
      %256 = dma.done [#allocation12], 16
    $region161: #{tpu_custom_call.1} parent=1 // pred_fallthru
      _
    // Predicated region
    $region162: #{tpu_custom_call.1} parent=1 // pred_check
      _
    $region163: #{tpu_custom_call.1} parent=1 // pred_check_branch
      %258 = sbr.rel (0) target = $region165
    $region164: #{tpu_custom_call.1} parent=1 // pred_region
      %260 = dma.done [#allocation15], 16
    $region165: #{tpu_custom_call.1} parent=1 // pred_fallthru
      _
    // Predicated region
    $region166: #{tpu_custom_call.1} parent=1 // pred_check
      _
    $region167: #{tpu_custom_call.1} parent=1 // pred_check_branch
      %262 = sbr.rel (0) target = $region169
    $region168: #{tpu_custom_call.1} parent=1 // pred_region
      %264 = dma.done [#allocation15], 512
    $region169: #{tpu_custom_call.1} parent=1 // pred_fallthru
      _
    %v265 = vld [vmem:[%s1] sm:$0xff]
    %v266 = vld [vmem:[%s1 + $0x8] sm:$0xff]
    %v267 = vld [vmem:[#allocation5] sm:$0xf]
    %v268 = vld [vmem:[%s9] sm:$0x1]
    %v270 = vperm.slane %v268, 0
    %vm272 = vcmask 31744
    %v274 = vsel %vm272, %v265, 0
    %v277 = vsel %vm272, %v266, 0
    %vm279 = vcmask 1043456
    %v281 = vsel %vm279, %v267, 0
    %283 = vmatpush.msra.mxu0 0.0
    %284 = vmatpush.msra.mxu0 0.0
    %285 = vmatpush.msra.mxu0 0.0
    %286 = vmatpush.msra.mxu0 0.0
    %287 = vmatpush.msra.mxu0 0.0
    %288 = vmatpush.msra.mxu0 0.0
    %289 = vmatpush.msra.mxu0 0.0
    %290 = vmatpush.msra.mxu0 0.0
    %291 = vmatpush.msra.mxu0 0.0
    %292 = vmatpush.msra.mxu0 0.0
    %293 = vmatpush.msra.mxu0 0.0
    %294 = vmatpush.msra.mxu0 0.0
    %295 = vmatpush.msra.mxu0 0.0
    %296 = vmatpush.msra.mxu0 0.0
    %297 = vmatpush.msra.mxu0 0.0
    %298 = vmatpush.msra.mxu0 %v281
    %299 = vmatmul.f32.gmra.mxu0 %v274
    %v300 = vpop.f32.mrf.mxu0
    %v301 = vadd.f32 %v270, %v300
    %302 = vmatmul.f32.gmra.mxu0 %v277
    %v303 = vpop.f32.mrf.mxu0
    %v304 = vadd.f32 %v270, %v303
    %305 = vdwg.mxu0
    %v306 = vld [vmem:[%s3] sm:$0xff]
    %v307 = vld [vmem:[%s3 + $0x8] sm:$0xff]
    %v308 = vadd.f32 %v301, %v306
    %v309 = vadd.f32 %v304, %v307
    %v310 = vld [vmem:[#allocation2] sm:$0xff]
    %v311 = vld [vmem:[#allocation2 + $0x8] sm:$0xff]
    %v312 = vld [vmem:[%s11] sm:$0xff]
    %v313 = vld [vmem:[%s11 + $0x8] sm:$0xff]
    %v314 = vld [vmem:[%s11 + $0x10] sm:$0xff]
    %v315 = vld [vmem:[%s11 + $0x18] sm:$0xff]
    %v316 = vld [vmem:[%s13] sm:$0x1]
    %v318 = vperm.slane %v316, 0
    %vm320 = vcmask 261120
    %v322 = vsel %vm320, %v308, 0
    %v325 = vsel %vm320, %v309, 0
    %327 = vmatpush.msra.mxu0 0.0
    %328 = vmatpush.msra.mxu0 0.0
    %329 = vmatpush.msra.mxu0 0.0
    %330 = vmatpush.msra.mxu0 0.0
    %331 = vmatpush.msra.mxu0 0.0
    %332 = vmatpush.msra.mxu0 0.0
    %333 = vmatpush.msra.mxu0 0.0
    %334 = vmatpush.msra.mxu0 0.0
    %335 = vmatpush.msra.mxu0 0.0
    %336 = vmatpush.msra.mxu0 0.0
    %337 = vmatpush.msra.mxu0 0.0
    %338 = vmatpush.msra.mxu0 0.0
    %339 = vmatpush.msra.mxu0 %v315
    %340 = vmatpush.msra.mxu0 %v314
    %341 = vmatpush.msra.mxu0 %v313
    %342 = vmatpush.msra.mxu0 %v312
    %343 = vmatmul.f32.gmra.mxu0 %v322
    %v344 = vpop.f32.mrf.mxu0
    %v345 = vadd.f32 %v318, %v344
    %346 = vmatmul.f32.gmra.mxu0 %v325
    %v347 = vpop.f32.mrf.mxu0
    %v348 = vadd.f32 %v318, %v347
    %349 = vdwg.mxu0
    %352 = vrot.lane.b32.xlu0 %v345, 96
    %v353 = vpop.permute.xlu0 %352
    %354 = vrot.lane.b32.xlu0 %v348, 96
    %v355 = vpop.permute.xlu0 %354
    %vm356 = vcmask 64512
    %v357 = vsel %vm356, %v345, 0
    %v359 = vsel %vm356, %v348, 0
    %v361 = vsel %vm356, %v353, 0
    %v363 = vsel %vm356, %v355, 0
    %365 = vmatpush.xpose.msra.mxu0 0.0
    %366 = vmatpush.xpose.msra.mxu0 0.0
    %367 = vmatpush.xpose.msra.mxu0 0.0
    %368 = vmatpush.xpose.msra.mxu0 0.0
    %369 = vmatpush.xpose.msra.mxu0 0.0
    %370 = vmatpush.xpose.msra.mxu0 0.0
    %371 = vmatpush.xpose.msra.mxu0 0.0
    %372 = vmatpush.xpose.msra.mxu0 0.0
    %373 = vmatpush.xpose.msra.mxu0 0.0
    %374 = vmatpush.xpose.msra.mxu0 0.0
    %375 = vmatpush.xpose.msra.mxu0 0.0
    %376 = vmatpush.xpose.msra.mxu0 0.0
    %377 = vmatpush.xpose.msra.mxu0 0.0
    %378 = vmatpush.xpose.msra.mxu0 0.0
    %379 = vmatpush.xpose.msra.mxu0 %v363
    %380 = vmatpush.xpose.msra.mxu0 %v361
    %381 = vmatmul.f32.gmra.mxu0 %v357
    %v382 = vpop.f32.mrf.mxu0
    %v383 = vadd.f32 %v310, %v382
    %384 = vmatmul.f32.gmra.mxu0 %v359
    %v385 = vpop.f32.mrf.mxu0
    %v386 = vadd.f32 %v311, %v385
    %387 = vdwg.mxu0
    %vm388 = vcmask 130048
    %v389 = vsel %vm388, %v383, -inf
    %390 = vmax.xlane.f32.xlu0 %v389
    %v391 = vpop.xlane.xlu0 %390
    %v392 = vsel %vm388, %v386, -inf
    %393 = vmax.xlane.f32.xlu0 %v392
    %v394 = vpop.xlane.xlu0 %393
    %v395 = vsub.f32 %v383, %v391
    %v396 = vsub.f32 %v386, %v394
    %v397 = vmul.f32 %v395, 1.442695
    %v398 = vpow.pop %v397
    %v399 = vmul.f32 %v396, 1.442695
    %v400 = vpow.pop %v399
    %v401 = vsel %vm388, %v398, 0.0
    %402 = vadd.xlane.f32.xlu0 %v401
    %v403 = vpop.xlane.xlu0 %402
    %v404 = vsel %vm388, %v400, 0.0
    %405 = vadd.xlane.f32.xlu0 %v404
    %v406 = vpop.xlane.xlu0 %405
    %v407 = vrcp.pop %v403
    %v408 = vrcp.pop %v406
    %v409 = vmul.f32 %v398, %v407
    %v410 = vmul.f32 %v400, %v408
    %411 = vrot.lane.b32.xlu0 %v345, 64
    %v412 = vpop.permute.xlu0 %411
    %413 = vrot.lane.b32.xlu0 %v348, 64
    %v414 = vpop.permute.xlu0 %413
    %v418 = vsel %vm388, %v409, 0
    %v421 = vsel %vm388, %v410, 0
    %423 = vmatpush.msra.mxu0 0.0
    %424 = vmatpush.msra.mxu0 0.0
    %425 = vmatpush.msra.mxu0 0.0
    %426 = vmatpush.msra.mxu0 0.0
    %427 = vmatpush.msra.mxu0 0.0
    %428 = vmatpush.msra.mxu0 0.0
    %429 = vmatpush.msra.mxu0 0.0
    %430 = vmatpush.msra.mxu0 0.0
    %431 = vmatpush.msra.mxu0 0.0
    %432 = vmatpush.msra.mxu0 0.0
    %433 = vmatpush.msra.mxu0 0.0
    %434 = vmatpush.msra.mxu0 0.0
    %435 = vmatpush.msra.mxu0 0.0
    %436 = vmatpush.msra.mxu0 0.0
    %437 = vmatpush.msra.mxu0 %v414
    %438 = vmatpush.msra.mxu0 %v412
    %439 = vmatmul.f32.gmra.mxu0 %v418
    %v440 = vpop.f32.mrf.mxu0
    %v441 = vadd.f32 0.0, %v440
    %442 = vmatmul.f32.gmra.mxu0 %v421
    %v443 = vpop.f32.mrf.mxu0
    %v444 = vadd.f32 0.0, %v443
    %445 = vdwg.mxu0
    %446 = vrot.lane.b32.xlu0 %v345, 120
    %v447 = vpop.permute.xlu0 %446
    %448 = vrot.lane.b32.xlu0 %v348, 120
    %v449 = vpop.permute.xlu0 %448
    %450 = vrot.lane.b32.xlu0 %v345, 88
    %v451 = vpop.permute.xlu0 %450
    %452 = vrot.lane.b32.xlu0 %v348, 88
    %v453 = vpop.permute.xlu0 %452
    %v454 = vsel %vm356, %v447, 0
    %v456 = vsel %vm356, %v449, 0
    %v458 = vsel %vm356, %v451, 0
    %v460 = vsel %vm356, %v453, 0
    %462 = vmatpush.xpose.msra.mxu0 0.0
    %463 = vmatpush.xpose.msra.mxu0 0.0
    %464 = vmatpush.xpose.msra.mxu0 0.0
    %465 = vmatpush.xpose.msra.mxu0 0.0
    %466 = vmatpush.xpose.msra.mxu0 0.0
    %467 = vmatpush.xpose.msra.mxu0 0.0
    %468 = vmatpush.xpose.msra.mxu0 0.0
    %469 = vmatpush.xpose.msra.mxu0 0.0
    %470 = vmatpush.xpose.msra.mxu0 0.0
    %471 = vmatpush.xpose.msra.mxu0 0.0
    %472 = vmatpush.xpose.msra.mxu0 0.0
    %473 = vmatpush.xpose.msra.mxu0 0.0
    %474 = vmatpush.xpose.msra.mxu0 0.0
    %475 = vmatpush.xpose.msra.mxu0 0.0
    %476 = vmatpush.xpose.msra.mxu0 %v460
    %477 = vmatpush.xpose.msra.mxu0 %v458
    %478 = vmatmul.f32.gmra.mxu0 %v454
    %v479 = vpop.f32.mrf.mxu0
    %v480 = vadd.f32 %v310, %v479
    %481 = vmatmul.f32.gmra.mxu0 %v456
    %v482 = vpop.f32.mrf.mxu0
    %v483 = vadd.f32 %v311, %v482
    %484 = vdwg.mxu0
    %v485 = vsel %vm388, %v480, -inf
    %486 = vmax.xlane.f32.xlu0 %v485
    %v487 = vpop.xlane.xlu0 %486
    %v488 = vsel %vm388, %v483, -inf
    %489 = vmax.xlane.f32.xlu0 %v488
    %v490 = vpop.xlane.xlu0 %489
    %v491 = vsub.f32 %v480, %v487
    %v492 = vsub.f32 %v483, %v490
    %v493 = vmul.f32 %v491, 1.442695
    %v494 = vpow.pop %v493
    %v495 = vmul.f32 %v492, 1.442695
    %v496 = vpow.pop %v495
    %v497 = vsel %vm388, %v494, 0.0
    %498 = vadd.xlane.f32.xlu0 %v497
    %v499 = vpop.xlane.xlu0 %498
    %v500 = vsel %vm388, %v496, 0.0
    %501 = vadd.xlane.f32.xlu0 %v500
    %v502 = vpop.xlane.xlu0 %501
    %v503 = vrcp.pop %v499
    %v504 = vrcp.pop %v502
    %v505 = vmul.f32 %v494, %v503
    %v506 = vmul.f32 %v496, %v504
    %507 = vrot.lane.b32.xlu0 %v345, 56
    %v508 = vpop.permute.xlu0 %507
    %509 = vrot.lane.b32.xlu0 %v348, 56
    %v510 = vpop.permute.xlu0 %509
    %v514 = vsel %vm388, %v505, 0
    %v517 = vsel %vm388, %v506, 0
    %519 = vmatpush.msra.mxu0 0.0
    %520 = vmatpush.msra.mxu0 0.0
    %521 = vmatpush.msra.mxu0 0.0
    %522 = vmatpush.msra.mxu0 0.0
    %523 = vmatpush.msra.mxu0 0.0
    %524 = vmatpush.msra.mxu0 0.0
    %525 = vmatpush.msra.mxu0 0.0
    %526 = vmatpush.msra.mxu0 0.0
    %527 = vmatpush.msra.mxu0 0.0
    %528 = vmatpush.msra.mxu0 0.0
    %529 = vmatpush.msra.mxu0 0.0
    %530 = vmatpush.msra.mxu0 0.0
    %531 = vmatpush.msra.mxu0 0.0
    %532 = vmatpush.msra.mxu0 0.0
    %533 = vmatpush.msra.mxu0 %v510
    %534 = vmatpush.msra.mxu0 %v508
    %535 = vmatmul.f32.gmra.mxu0 %v514
    %v536 = vpop.f32.mrf.mxu0
    %v537 = vadd.f32 0.0, %v536
    %538 = vmatmul.f32.gmra.mxu0 %v517
    %v539 = vpop.f32.mrf.mxu0
    %v540 = vadd.f32 0.0, %v539
    %541 = vdwg.mxu0
    %542 = vrot.lane.b32.xlu0 %v345, 112
    %v543 = vpop.permute.xlu0 %542
    %544 = vrot.lane.b32.xlu0 %v348, 112
    %v545 = vpop.permute.xlu0 %544
    %546 = vrot.lane.b32.xlu0 %v345, 80
    %v547 = vpop.permute.xlu0 %546
    %548 = vrot.lane.b32.xlu0 %v348, 80
    %v549 = vpop.permute.xlu0 %548
    %v550 = vsel %vm356, %v543, 0
    %v552 = vsel %vm356, %v545, 0
    %v554 = vsel %vm356, %v547, 0
    %v556 = vsel %vm356, %v549, 0
    %558 = vmatpush.xpose.msra.mxu0 0.0
    %559 = vmatpush.xpose.msra.mxu0 0.0
    %560 = vmatpush.xpose.msra.mxu0 0.0
    %561 = vmatpush.xpose.msra.mxu0 0.0
    %562 = vmatpush.xpose.msra.mxu0 0.0
    %563 = vmatpush.xpose.msra.mxu0 0.0
    %564 = vmatpush.xpose.msra.mxu0 0.0
    %565 = vmatpush.xpose.msra.mxu0 0.0
    %566 = vmatpush.xpose.msra.mxu0 0.0
    %567 = vmatpush.xpose.msra.mxu0 0.0
    %568 = vmatpush.xpose.msra.mxu0 0.0
    %569 = vmatpush.xpose.msra.mxu0 0.0
    %570 = vmatpush.xpose.msra.mxu0 0.0
    %571 = vmatpush.xpose.msra.mxu0 0.0
    %572 = vmatpush.xpose.msra.mxu0 %v556
    %573 = vmatpush.xpose.msra.mxu0 %v554
    %574 = vmatmul.f32.gmra.mxu0 %v550
    %v575 = vpop.f32.mrf.mxu0
    %v576 = vadd.f32 %v310, %v575
    %577 = vmatmul.f32.gmra.mxu0 %v552
    %v578 = vpop.f32.mrf.mxu0
    %v579 = vadd.f32 %v311, %v578
    %580 = vdwg.mxu0
    %v581 = vsel %vm388, %v576, -inf
    %582 = vmax.xlane.f32.xlu0 %v581
    %v583 = vpop.xlane.xlu0 %582
    %v584 = vsel %vm388, %v579, -inf
    %585 = vmax.xlane.f32.xlu0 %v584
    %v586 = vpop.xlane.xlu0 %585
    %v587 = vsub.f32 %v576, %v583
    %v588 = vsub.f32 %v579, %v586
    %v589 = vmul.f32 %v587, 1.442695
    %v590 = vpow.pop %v589
    %v591 = vmul.f32 %v588, 1.442695
    %v592 = vpow.pop %v591
    %v593 = vsel %vm388, %v590, 0.0
    %594 = vadd.xlane.f32.xlu0 %v593
    %v595 = vpop.xlane.xlu0 %594
    %v596 = vsel %vm388, %v592, 0.0
    %597 = vadd.xlane.f32.xlu0 %v596
    %v598 = vpop.xlane.xlu0 %597
    %v599 = vrcp.pop %v595
    %v600 = vrcp.pop %v598
    %v601 = vmul.f32 %v590, %v599
    %v602 = vmul.f32 %v592, %v600
    %603 = vrot.lane.b32.xlu0 %v345, 48
    %v604 = vpop.permute.xlu0 %603
    %605 = vrot.lane.b32.xlu0 %v348, 48
    %v606 = vpop.permute.xlu0 %605
    %v610 = vsel %vm388, %v601, 0
    %v613 = vsel %vm388, %v602, 0
    %615 = vmatpush.msra.mxu0 0.0
    %616 = vmatpush.msra.mxu0 0.0
    %617 = vmatpush.msra.mxu0 0.0
    %618 = vmatpush.msra.mxu0 0.0
    %619 = vmatpush.msra.mxu0 0.0
    %620 = vmatpush.msra.mxu0 0.0
    %621 = vmatpush.msra.mxu0 0.0
    %622 = vmatpush.msra.mxu0 0.0
    %623 = vmatpush.msra.mxu0 0.0
    %624 = vmatpush.msra.mxu0 0.0
    %625 = vmatpush.msra.mxu0 0.0
    %626 = vmatpush.msra.mxu0 0.0
    %627 = vmatpush.msra.mxu0 0.0
    %628 = vmatpush.msra.mxu0 0.0
    %629 = vmatpush.msra.mxu0 %v606
    %630 = vmatpush.msra.mxu0 %v604
    %631 = vmatmul.f32.gmra.mxu0 %v610
    %v632 = vpop.f32.mrf.mxu0
    %v633 = vadd.f32 0.0, %v632
    %634 = vmatmul.f32.gmra.mxu0 %v613
    %v635 = vpop.f32.mrf.mxu0
    %v636 = vadd.f32 0.0, %v635
    %637 = vdwg.mxu0
    %638 = vrot.lane.b32.xlu0 %v345, 104
    %v639 = vpop.permute.xlu0 %638
    %640 = vrot.lane.b32.xlu0 %v348, 104
    %v641 = vpop.permute.xlu0 %640
    %642 = vrot.lane.b32.xlu0 %v345, 72
    %v643 = vpop.permute.xlu0 %642
    %644 = vrot.lane.b32.xlu0 %v348, 72
    %v645 = vpop.permute.xlu0 %644
    %v646 = vsel %vm356, %v639, 0
    %v648 = vsel %vm356, %v641, 0
    %v650 = vsel %vm356, %v643, 0
    %v652 = vsel %vm356, %v645, 0
    %654 = vmatpush.xpose.msra.mxu0 0.0
    %655 = vmatpush.xpose.msra.mxu0 0.0
    %656 = vmatpush.xpose.msra.mxu0 0.0
    %657 = vmatpush.xpose.msra.mxu0 0.0
    %658 = vmatpush.xpose.msra.mxu0 0.0
    %659 = vmatpush.xpose.msra.mxu0 0.0
    %660 = vmatpush.xpose.msra.mxu0 0.0
    %661 = vmatpush.xpose.msra.mxu0 0.0
    %662 = vmatpush.xpose.msra.mxu0 0.0
    %663 = vmatpush.xpose.msra.mxu0 0.0
    %664 = vmatpush.xpose.msra.mxu0 0.0
    %665 = vmatpush.xpose.msra.mxu0 0.0
    %666 = vmatpush.xpose.msra.mxu0 0.0
    %667 = vmatpush.xpose.msra.mxu0 0.0
    %668 = vmatpush.xpose.msra.mxu0 %v652
    %669 = vmatpush.xpose.msra.mxu0 %v650
    %670 = vmatmul.f32.gmra.mxu0 %v646
    %v671 = vpop.f32.mrf.mxu0
    %v672 = vadd.f32 %v310, %v671
    %673 = vmatmul.f32.gmra.mxu0 %v648
    %v674 = vpop.f32.mrf.mxu0
    %v675 = vadd.f32 %v311, %v674
    %676 = vdwg.mxu0
    %v677 = vsel %vm388, %v672, -inf
    %678 = vmax.xlane.f32.xlu0 %v677
    %v679 = vpop.xlane.xlu0 %678
    %v680 = vsel %vm388, %v675, -inf
    %681 = vmax.xlane.f32.xlu0 %v680
    %v682 = vpop.xlane.xlu0 %681
    %v683 = vsub.f32 %v672, %v679
    %v684 = vsub.f32 %v675, %v682
    %v685 = vmul.f32 %v683, 1.442695
    %v686 = vpow.pop %v685
    %v687 = vmul.f32 %v684, 1.442695
    %v688 = vpow.pop %v687
    %v689 = vsel %vm388, %v686, 0.0
    %690 = vadd.xlane.f32.xlu0 %v689
    %v691 = vpop.xlane.xlu0 %690
    %v692 = vsel %vm388, %v688, 0.0
    %693 = vadd.xlane.f32.xlu0 %v692
    %v694 = vpop.xlane.xlu0 %693
    %v695 = vrcp.pop %v691
    %v696 = vrcp.pop %v694
    %v697 = vmul.f32 %v686, %v695
    %v698 = vmul.f32 %v688, %v696
    %699 = vrot.lane.b32.xlu0 %v345, 40
    %v700 = vpop.permute.xlu0 %699
    %701 = vrot.lane.b32.xlu0 %v348, 40
    %v702 = vpop.permute.xlu0 %701
    %v706 = vsel %vm388, %v697, 0
    %v709 = vsel %vm388, %v698, 0
    %711 = vmatpush.msra.mxu0 0.0
    %712 = vmatpush.msra.mxu0 0.0
    %713 = vmatpush.msra.mxu0 0.0
    %714 = vmatpush.msra.mxu0 0.0
    %715 = vmatpush.msra.mxu0 0.0
    %716 = vmatpush.msra.mxu0 0.0
    %717 = vmatpush.msra.mxu0 0.0
    %718 = vmatpush.msra.mxu0 0.0
    %719 = vmatpush.msra.mxu0 0.0
    %720 = vmatpush.msra.mxu0 0.0
    %721 = vmatpush.msra.mxu0 0.0
    %722 = vmatpush.msra.mxu0 0.0
    %723 = vmatpush.msra.mxu0 0.0
    %724 = vmatpush.msra.mxu0 0.0
    %725 = vmatpush.msra.mxu0 %v702
    %726 = vmatpush.msra.mxu0 %v700
    %727 = vmatmul.f32.gmra.mxu0 %v706
    %v728 = vpop.f32.mrf.mxu0
    %v729 = vadd.f32 0.0, %v728
    %730 = vmatmul.f32.gmra.mxu0 %v709
    %v731 = vpop.f32.mrf.mxu0
    %v732 = vadd.f32 0.0, %v731
    %733 = vdwg.mxu0
    %736 = vrot.lane.b32.xlu0 %v537, 8
    %v737 = vpop.permute.xlu0 %736
    %738 = vrot.lane.b32.xlu0 %v540, 8
    %v739 = vpop.permute.xlu0 %738
    %744 = vrot.lane.b32.xlu0 %v633, 16
    %v745 = vpop.permute.xlu0 %744
    %746 = vrot.lane.b32.xlu0 %v636, 16
    %v747 = vpop.permute.xlu0 %746
    %752 = vrot.lane.b32.xlu0 %v729, 24
    %v753 = vpop.permute.xlu0 %752
    %754 = vrot.lane.b32.xlu0 %v732, 24
    %v755 = vpop.permute.xlu0 %754
    %v758 = vsel %vm356, %v441, %v737
    %v759 = vsel %vm356, %v444, %v739
    %v760 = vsel %vm388, %v758, %v745
    %v761 = vsel %vm388, %v759, %v747
    %vm762 = vcmask 195584
    %v763 = vsel %vm762, %v760, %v753
    %v764 = vsel %vm762, %v761, %v755
    %v765 = vld [vmem:[%s15] sm:$0xff]
    %v766 = vld [vmem:[%s15 + $0x8] sm:$0xff]
    %v767 = vld [vmem:[%s15 + $0x10] sm:$0xff]
    %v768 = vld [vmem:[%s15 + $0x18] sm:$0xff]
    %v769 = vld [vmem:[%s17] sm:$0x1]
    %v771 = vperm.slane %v769, 0
    %v774 = vsel %vm320, %v763, 0
    %v777 = vsel %vm320, %v764, 0
    %779 = vmatpush.msra.mxu0 0.0
    %780 = vmatpush.msra.mxu0 0.0
    %781 = vmatpush.msra.mxu0 0.0
    %782 = vmatpush.msra.mxu0 0.0
    %783 = vmatpush.msra.mxu0 0.0
    %784 = vmatpush.msra.mxu0 0.0
    %785 = vmatpush.msra.mxu0 0.0
    %786 = vmatpush.msra.mxu0 0.0
    %787 = vmatpush.msra.mxu0 0.0
    %788 = vmatpush.msra.mxu0 0.0
    %789 = vmatpush.msra.mxu0 0.0
    %790 = vmatpush.msra.mxu0 0.0
    %791 = vmatpush.msra.mxu0 %v768
    %792 = vmatpush.msra.mxu0 %v767
    %793 = vmatpush.msra.mxu0 %v766
    %794 = vmatpush.msra.mxu0 %v765
    %795 = vmatmul.f32.gmra.mxu0 %v774
    %v796 = vpop.f32.mrf.mxu0
    %v797 = vadd.f32 %v771, %v796
    %798 = vmatmul.f32.gmra.mxu0 %v777
    %v799 = vpop.f32.mrf.mxu0
    %v800 = vadd.f32 %v771, %v799
    %801 = vdwg.mxu0
    %v802 = vadd.f32 %v308, %v797
    %v803 = vadd.f32 %v309, %v800
    %v804 = vld [vmem:[#allocation7] sm:$0x1]
    %v805 = vld [vmem:[#allocation8] sm:$0x1]
    %v806 = vsel %vm320, %v802, 0.0
    %807 = vadd.xlane.f32.xlu0 %v806
    %v808 = vpop.xlane.xlu0 %807
    %v809 = vsel %vm320, %v803, 0.0
    %810 = vadd.xlane.f32.xlu0 %v809
    %v811 = vpop.xlane.xlu0 %810
    %v812 = vrcp.pop 32.0
    %v813 = vmul.f32 32.0, %v812
    %v814 = vsub.f32 1.0, %v813
    %v815 = vmul.f32 %v812, %v814
    %v816 = vadd.f32 %v812, %v815
    %vm817 = vweird.f32 %v812
    %v818 = vsel %vm817, %v812, %v816
    %v819 = vmul.f32 %v808, %v818
    %v820 = vmul.f32 %v811, %v818
    %v821 = vsub.f32 %v802, %v819
    %v822 = vsub.f32 %v803, %v820
    %v823 = vmul.f32 %v821, %v821
    %v824 = vmul.f32 %v822, %v822
    %v825 = vsel %vm320, %v823, 0.0
    %826 = vadd.xlane.f32.xlu0 %v825
    %v827 = vpop.xlane.xlu0 %826
    %v828 = vsel %vm320, %v824, 0.0
    %829 = vadd.xlane.f32.xlu0 %v828
    %v830 = vpop.xlane.xlu0 %829
    %v831 = vmul.f32 %v827, %v818
    %v832 = vmul.f32 %v830, %v818
    %v833 = vadd.f32 %v831, 1e-05
    %v834 = vadd.f32 %v832, 1e-05
    %v835 = vrsqrt.pop %v833
    %v836 = vmul.f32 %v835, %v833
    %v837 = vmul.f32 %v836, %v835
    %v838 = vmul.f32 0.5, %v837
    %v839 = vsub.f32 1.5, %v838
    %v840 = vmul.f32 %v835, %v839
    %vm841 = vweird.f32 %v833
    %vm842 = vweird.f32 %v835
    %vm843 = vmor %vm841, %vm842
    %v844 = vsel %vm843, %v835, %v840
    %v845 = vrsqrt.pop %v834
    %v846 = vmul.f32 %v845, %v834
    %v847 = vmul.f32 %v846, %v845
    %v848 = vmul.f32 0.5, %v847
    %v849 = vsub.f32 1.5, %v848
    %v850 = vmul.f32 %v845, %v849
    %vm851 = vweird.f32 %v834
    %vm852 = vweird.f32 %v845
    %vm853 = vmor %vm851, %vm852
    %v854 = vsel %vm853, %v845, %v850
    %v855 = vmul.f32 %v821, %v844
    %v856 = vmul.f32 %v822, %v854
    %v858 = vperm.slane %v804, 0
    %v860 = vmul.f32 %v855, %v858
    %v861 = vmul.f32 %v856, %v858
    %v863 = vperm.slane %v805, 0
    %v865 = vadd.f32 %v860, %v863
    %v866 = vadd.f32 %v861, %v863
    %v867 = vld [vmem:[%s23] sm:$0xff]
    %v868 = vld [vmem:[%s23 + $0x8] sm:$0xff]
    %v869 = vld [vmem:[%s23 + $0x10] sm:$0xff]
    %v870 = vld [vmem:[%s23 + $0x18] sm:$0xff]
    %v871 = vld [vmem:[#allocation10] sm:$0x1]
    %v873 = vperm.slane %v871, 0
    %v876 = vsel %vm320, %v865, 0
    %v879 = vsel %vm320, %v866, 0
    %881 = vmatpush.msra.mxu0 0.0
    %882 = vmatpush.msra.mxu0 0.0
    %883 = vmatpush.msra.mxu0 0.0
    %884 = vmatpush.msra.mxu0 0.0
    %885 = vmatpush.msra.mxu0 0.0
    %886 = vmatpush.msra.mxu0 0.0
    %887 = vmatpush.msra.mxu0 0.0
    %888 = vmatpush.msra.mxu0 0.0
    %889 = vmatpush.msra.mxu0 0.0
    %890 = vmatpush.msra.mxu0 0.0
    %891 = vmatpush.msra.mxu0 0.0
    %892 = vmatpush.msra.mxu0 0.0
    %893 = vmatpush.msra.mxu0 %v870
    %894 = vmatpush.msra.mxu0 %v869
    %895 = vmatpush.msra.mxu0 %v868
    %896 = vmatpush.msra.mxu0 %v867
    %897 = vmatmul.f32.gmra.mxu0 %v876
    %v898 = vpop.f32.mrf.mxu0
    %v899 = vadd.f32 %v873, %v898
    %900 = vmatmul.f32.gmra.mxu0 %v879
    %v901 = vpop.f32.mrf.mxu0
    %v902 = vadd.f32 %v873, %v901
    %903 = vdwg.mxu0
    %v904 = vmax.f32 %v899, 0.0
    %v905 = vmax.f32 %v902, 0.0
    %v906 = vld [vmem:[%s27] sm:$0xff]
    %v907 = vld [vmem:[%s27 + $0x8] sm:$0xff]
    %v908 = vld [vmem:[%s27 + $0x10] sm:$0xff]
    %v909 = vld [vmem:[%s27 + $0x18] sm:$0xff]
    %v910 = vld [vmem:[%s27 + $0x20] sm:$0xff]
    %v911 = vld [vmem:[%s27 + $0x28] sm:$0xff]
    %v912 = vld [vmem:[%s27 + $0x30] sm:$0xff]
    %v913 = vld [vmem:[%s27 + $0x38] sm:$0xff]
    %v914 = vld [vmem:[#allocation11] sm:$0x1]
    %v916 = vperm.slane %v914, 0
    %vm918 = vcmask 523264
    %v920 = vsel %vm918, %v904, 0
    %v923 = vsel %vm918, %v905, 0
    %925 = vmatpush.msra.mxu0 0.0
    %926 = vmatpush.msra.mxu0 0.0
    %927 = vmatpush.msra.mxu0 0.0
    %928 = vmatpush.msra.mxu0 0.0
    %929 = vmatpush.msra.mxu0 0.0
    %930 = vmatpush.msra.mxu0 0.0
    %931 = vmatpush.msra.mxu0 0.0
    %932 = vmatpush.msra.mxu0 0.0
    %933 = vmatpush.msra.mxu0 %v913
    %934 = vmatpush.msra.mxu0 %v912
    %935 = vmatpush.msra.mxu0 %v911
    %936 = vmatpush.msra.mxu0 %v910
    %937 = vmatpush.msra.mxu0 %v909
    %938 = vmatpush.msra.mxu0 %v908
    %939 = vmatpush.msra.mxu0 %v907
    %940 = vmatpush.msra.mxu0 %v906
    %941 = vmatmul.f32.gmra.mxu0 %v920
    %v942 = vpop.f32.mrf.mxu0
    %v943 = vadd.f32 %v916, %v942
    %944 = vmatmul.f32.gmra.mxu0 %v923
    %v945 = vpop.f32.mrf.mxu0
    %v946 = vadd.f32 %v916, %v945
    %947 = vdwg.mxu0
    %v948 = vadd.f32 %v865, %v943
    %v949 = vadd.f32 %v866, %v946
    %v950 = vld [vmem:[#allocation13] sm:$0x1]
    %v951 = vld [vmem:[#allocation14] sm:$0x1]
    %v952 = vsel %vm320, %v948, 0.0
    %953 = vadd.xlane.f32.xlu0 %v952
    %v954 = vpop.xlane.xlu0 %953
    %v955 = vsel %vm320, %v949, 0.0
    %956 = vadd.xlane.f32.xlu0 %v955
    %v957 = vpop.xlane.xlu0 %956
    %v958 = vmul.f32 %v954, %v818
    %v959 = vmul.f32 %v957, %v818
    %v960 = vsub.f32 %v948, %v958
    %v961 = vsub.f32 %v949, %v959
    %v962 = vmul.f32 %v960, %v960
    %v963 = vmul.f32 %v961, %v961
    %v964 = vsel %vm320, %v962, 0.0
    %965 = vadd.xlane.f32.xlu0 %v964
    %v966 = vpop.xlane.xlu0 %965
    %v967 = vsel %vm320, %v963, 0.0
    %968 = vadd.xlane.f32.xlu0 %v967
    %v969 = vpop.xlane.xlu0 %968
    %v970 = vmul.f32 %v966, %v818
    %v971 = vmul.f32 %v969, %v818
    %v972 = vadd.f32 %v970, 1e-05
    %v973 = vadd.f32 %v971, 1e-05
    %v974 = vrsqrt.pop %v972
    %v975 = vmul.f32 %v974, %v972
    %v976 = vmul.f32 %v975, %v974
    %v977 = vmul.f32 0.5, %v976
    %v978 = vsub.f32 1.5, %v977
    %v979 = vmul.f32 %v974, %v978
    %vm980 = vweird.f32 %v972
    %vm981 = vweird.f32 %v974
    %vm982 = vmor %vm980, %vm981
    %v983 = vsel %vm982, %v974, %v979
    %v984 = vrsqrt.pop %v973
    %v985 = vmul.f32 %v984, %v973
    %v986 = vmul.f32 %v985, %v984
    %v987 = vmul.f32 0.5, %v986
    %v988 = vsub.f32 1.5, %v987
    %v989 = vmul.f32 %v984, %v988
    %vm990 = vweird.f32 %v973
    %vm991 = vweird.f32 %v984
    %vm992 = vmor %vm990, %vm991
    %v993 = vsel %vm992, %v984, %v989
    %v994 = vmul.f32 %v960, %v983
    %v995 = vmul.f32 %v961, %v993
    %v997 = vperm.slane %v950, 0
    %v999 = vmul.f32 %v994, %v997
    %v1000 = vmul.f32 %v995, %v997
    %v1002 = vperm.slane %v951, 0
    %v1004 = vadd.f32 %v999, %v1002
    %v1005 = vadd.f32 %v1000, %v1002
    %v1006 = vld [vmem:[%s35] sm:$0xff]
    %v1007 = vld [vmem:[%s35 + $0x8] sm:$0xff]
    %v1008 = vld [vmem:[%s35 + $0x10] sm:$0xff]
    %v1009 = vld [vmem:[%s35 + $0x18] sm:$0xff]
    %v1010 = vld [vmem:[%s37] sm:$0x1]
    %v1012 = vperm.slane %v1010, 0
    %v1015 = vsel %vm320, %v1004, 0
    %v1018 = vsel %vm320, %v1005, 0
    %1020 = vmatpush.msra.mxu0 0.0
    %1021 = vmatpush.msra.mxu0 0.0
    %1022 = vmatpush.msra.mxu0 0.0
    %1023 = vmatpush.msra.mxu0 0.0
    %1024 = vmatpush.msra.mxu0 0.0
    %1025 = vmatpush.msra.mxu0 0.0
    %1026 = vmatpush.msra.mxu0 0.0
    %1027 = vmatpush.msra.mxu0 0.0
    %1028 = vmatpush.msra.mxu0 0.0
    %1029 = vmatpush.msra.mxu0 0.0
    %1030 = vmatpush.msra.mxu0 0.0
    %1031 = vmatpush.msra.mxu0 0.0
    %1032 = vmatpush.msra.mxu0 %v1009
    %1033 = vmatpush.msra.mxu0 %v1008
    %1034 = vmatpush.msra.mxu0 %v1007
    %1035 = vmatpush.msra.mxu0 %v1006
    %1036 = vmatmul.f32.gmra.mxu0 %v1015
    %v1037 = vpop.f32.mrf.mxu0
    %v1038 = vadd.f32 %v1012, %v1037
    %1039 = vmatmul.f32.gmra.mxu0 %v1018
    %v1040 = vpop.f32.mrf.mxu0
    %v1041 = vadd.f32 %v1012, %v1040
    %1042 = vdwg.mxu0
    %1045 = vrot.lane.b32.xlu0 %v1038, 96
    %v1046 = vpop.permute.xlu0 %1045
    %1047 = vrot.lane.b32.xlu0 %v1041, 96
    %v1048 = vpop.permute.xlu0 %1047
    %v1049 = vsel %vm356, %v1038, 0
    %v1051 = vsel %vm356, %v1041, 0
    %v1053 = vsel %vm356, %v1046, 0
    %v1055 = vsel %vm356, %v1048, 0
    %1057 = vmatpush.xpose.msra.mxu0 0.0
    %1058 = vmatpush.xpose.msra.mxu0 0.0
    %1059 = vmatpush.xpose.msra.mxu0 0.0
    %1060 = vmatpush.xpose.msra.mxu0 0.0
    %1061 = vmatpush.xpose.msra.mxu0 0.0
    %1062 = vmatpush.xpose.msra.mxu0 0.0
    %1063 = vmatpush.xpose.msra.mxu0 0.0
    %1064 = vmatpush.xpose.msra.mxu0 0.0
    %1065 = vmatpush.xpose.msra.mxu0 0.0
    %1066 = vmatpush.xpose.msra.mxu0 0.0
    %1067 = vmatpush.xpose.msra.mxu0 0.0
    %1068 = vmatpush.xpose.msra.mxu0 0.0
    %1069 = vmatpush.xpose.msra.mxu0 0.0
    %1070 = vmatpush.xpose.msra.mxu0 0.0
    %1071 = vmatpush.xpose.msra.mxu0 %v1055
    %1072 = vmatpush.xpose.msra.mxu0 %v1053
    %1073 = vmatmul.f32.gmra.mxu0 %v1049
    %v1074 = vpop.f32.mrf.mxu0
    %v1075 = vadd.f32 %v310, %v1074
    %1076 = vmatmul.f32.gmra.mxu0 %v1051
    %v1077 = vpop.f32.mrf.mxu0
    %v1078 = vadd.f32 %v311, %v1077
    %1079 = vdwg.mxu0
    %v1080 = vsel %vm388, %v1075, -inf
    %1081 = vmax.xlane.f32.xlu0 %v1080
    %v1082 = vpop.xlane.xlu0 %1081
    %v1083 = vsel %vm388, %v1078, -inf
    %1084 = vmax.xlane.f32.xlu0 %v1083
    %v1085 = vpop.xlane.xlu0 %1084
    %v1086 = vsub.f32 %v1075, %v1082
    %v1087 = vsub.f32 %v1078, %v1085
    %v1088 = vmul.f32 %v1086, 1.442695
    %v1089 = vpow.pop %v1088
    %v1090 = vmul.f32 %v1087, 1.442695
    %v1091 = vpow.pop %v1090
    %v1092 = vsel %vm388, %v1089, 0.0
    %1093 = vadd.xlane.f32.xlu0 %v1092
    %v1094 = vpop.xlane.xlu0 %1093
    %v1095 = vsel %vm388, %v1091, 0.0
    %1096 = vadd.xlane.f32.xlu0 %v1095
    %v1097 = vpop.xlane.xlu0 %1096
    %v1098 = vrcp.pop %v1094
    %v1099 = vrcp.pop %v1097
    %v1100 = vmul.f32 %v1089, %v1098
    %v1101 = vmul.f32 %v1091, %v1099
    %1102 = vrot.lane.b32.xlu0 %v1038, 64
    %v1103 = vpop.permute.xlu0 %1102
    %1104 = vrot.lane.b32.xlu0 %v1041, 64
    %v1105 = vpop.permute.xlu0 %1104
    %v1109 = vsel %vm388, %v1100, 0
    %v1112 = vsel %vm388, %v1101, 0
    %1114 = vmatpush.msra.mxu0 0.0
    %1115 = vmatpush.msra.mxu0 0.0
    %1116 = vmatpush.msra.mxu0 0.0
    %1117 = vmatpush.msra.mxu0 0.0
    %1118 = vmatpush.msra.mxu0 0.0
    %1119 = vmatpush.msra.mxu0 0.0
    %1120 = vmatpush.msra.mxu0 0.0
    %1121 = vmatpush.msra.mxu0 0.0
    %1122 = vmatpush.msra.mxu0 0.0
    %1123 = vmatpush.msra.mxu0 0.0
    %1124 = vmatpush.msra.mxu0 0.0
    %1125 = vmatpush.msra.mxu0 0.0
    %1126 = vmatpush.msra.mxu0 0.0
    %1127 = vmatpush.msra.mxu0 0.0
    %1128 = vmatpush.msra.mxu0 %v1105
    %1129 = vmatpush.msra.mxu0 %v1103
    %1130 = vmatmul.f32.gmra.mxu0 %v1109
    %v1131 = vpop.f32.mrf.mxu0
    %v1132 = vadd.f32 0.0, %v1131
    %1133 = vmatmul.f32.gmra.mxu0 %v1112
    %v1134 = vpop.f32.mrf.mxu0
    %v1135 = vadd.f32 0.0, %v1134
    %1136 = vdwg.mxu0
    %1137 = vrot.lane.b32.xlu0 %v1038, 120
    %v1138 = vpop.permute.xlu0 %1137
    %1139 = vrot.lane.b32.xlu0 %v1041, 120
    %v1140 = vpop.permute.xlu0 %1139
    %1141 = vrot.lane.b32.xlu0 %v1038, 88
    %v1142 = vpop.permute.xlu0 %1141
    %1143 = vrot.lane.b32.xlu0 %v1041, 88
    %v1144 = vpop.permute.xlu0 %1143
    %v1145 = vsel %vm356, %v1138, 0
    %v1147 = vsel %vm356, %v1140, 0
    %v1149 = vsel %vm356, %v1142, 0
    %v1151 = vsel %vm356, %v1144, 0
    %1153 = vmatpush.xpose.msra.mxu0 0.0
    %1154 = vmatpush.xpose.msra.mxu0 0.0
    %1155 = vmatpush.xpose.msra.mxu0 0.0
    %1156 = vmatpush.xpose.msra.mxu0 0.0
    %1157 = vmatpush.xpose.msra.mxu0 0.0
    %1158 = vmatpush.xpose.msra.mxu0 0.0
    %1159 = vmatpush.xpose.msra.mxu0 0.0
    %1160 = vmatpush.xpose.msra.mxu0 0.0
    %1161 = vmatpush.xpose.msra.mxu0 0.0
    %1162 = vmatpush.xpose.msra.mxu0 0.0
    %1163 = vmatpush.xpose.msra.mxu0 0.0
    %1164 = vmatpush.xpose.msra.mxu0 0.0
    %1165 = vmatpush.xpose.msra.mxu0 0.0
    %1166 = vmatpush.xpose.msra.mxu0 0.0
    %1167 = vmatpush.xpose.msra.mxu0 %v1151
    %1168 = vmatpush.xpose.msra.mxu0 %v1149
    %1169 = vmatmul.f32.gmra.mxu0 %v1145
    %v1170 = vpop.f32.mrf.mxu0
    %v1171 = vadd.f32 %v310, %v1170
    %1172 = vmatmul.f32.gmra.mxu0 %v1147
    %v1173 = vpop.f32.mrf.mxu0
    %v1174 = vadd.f32 %v311, %v1173
    %1175 = vdwg.mxu0
    %v1176 = vsel %vm388, %v1171, -inf
    %1177 = vmax.xlane.f32.xlu0 %v1176
    %v1178 = vpop.xlane.xlu0 %1177
    %v1179 = vsel %vm388, %v1174, -inf
    %1180 = vmax.xlane.f32.xlu0 %v1179
    %v1181 = vpop.xlane.xlu0 %1180
    %v1182 = vsub.f32 %v1171, %v1178
    %v1183 = vsub.f32 %v1174, %v1181
    %v1184 = vmul.f32 %v1182, 1.442695
    %v1185 = vpow.pop %v1184
    %v1186 = vmul.f32 %v1183, 1.442695
    %v1187 = vpow.pop %v1186
    %v1188 = vsel %vm388, %v1185, 0.0
    %1189 = vadd.xlane.f32.xlu0 %v1188
    %v1190 = vpop.xlane.xlu0 %1189
    %v1191 = vsel %vm388, %v1187, 0.0
    %1192 = vadd.xlane.f32.xlu0 %v1191
    %v1193 = vpop.xlane.xlu0 %1192
    %v1194 = vrcp.pop %v1190
    %v1195 = vrcp.pop %v1193
    %v1196 = vmul.f32 %v1185, %v1194
    %v1197 = vmul.f32 %v1187, %v1195
    %1198 = vrot.lane.b32.xlu0 %v1038, 56
    %v1199 = vpop.permute.xlu0 %1198
    %1200 = vrot.lane.b32.xlu0 %v1041, 56
    %v1201 = vpop.permute.xlu0 %1200
    %v1205 = vsel %vm388, %v1196, 0
    %v1208 = vsel %vm388, %v1197, 0
    %1210 = vmatpush.msra.mxu0 0.0
    %1211 = vmatpush.msra.mxu0 0.0
    %1212 = vmatpush.msra.mxu0 0.0
    %1213 = vmatpush.msra.mxu0 0.0
    %1214 = vmatpush.msra.mxu0 0.0
    %1215 = vmatpush.msra.mxu0 0.0
    %1216 = vmatpush.msra.mxu0 0.0
    %1217 = vmatpush.msra.mxu0 0.0
    %1218 = vmatpush.msra.mxu0 0.0
    %1219 = vmatpush.msra.mxu0 0.0
    %1220 = vmatpush.msra.mxu0 0.0
    %1221 = vmatpush.msra.mxu0 0.0
    %1222 = vmatpush.msra.mxu0 0.0
    %1223 = vmatpush.msra.mxu0 0.0
    %1224 = vmatpush.msra.mxu0 %v1201
    %1225 = vmatpush.msra.mxu0 %v1199
    %1226 = vmatmul.f32.gmra.mxu0 %v1205
    %v1227 = vpop.f32.mrf.mxu0
    %v1228 = vadd.f32 0.0, %v1227
    %1229 = vmatmul.f32.gmra.mxu0 %v1208
    %v1230 = vpop.f32.mrf.mxu0
    %v1231 = vadd.f32 0.0, %v1230
    %1232 = vdwg.mxu0
    %1233 = vrot.lane.b32.xlu0 %v1038, 112
    %v1234 = vpop.permute.xlu0 %1233
    %1235 = vrot.lane.b32.xlu0 %v1041, 112
    %v1236 = vpop.permute.xlu0 %1235
    %1237 = vrot.lane.b32.xlu0 %v1038, 80
    %v1238 = vpop.permute.xlu0 %1237
    %1239 = vrot.lane.b32.xlu0 %v1041, 80
    %v1240 = vpop.permute.xlu0 %1239
    %v1241 = vsel %vm356, %v1234, 0
    %v1243 = vsel %vm356, %v1236, 0
    %v1245 = vsel %vm356, %v1238, 0
    %v1247 = vsel %vm356, %v1240, 0
    %1249 = vmatpush.xpose.msra.mxu0 0.0
    %1250 = vmatpush.xpose.msra.mxu0 0.0
    %1251 = vmatpush.xpose.msra.mxu0 0.0
    %1252 = vmatpush.xpose.msra.mxu0 0.0
    %1253 = vmatpush.xpose.msra.mxu0 0.0
    %1254 = vmatpush.xpose.msra.mxu0 0.0
    %1255 = vmatpush.xpose.msra.mxu0 0.0
    %1256 = vmatpush.xpose.msra.mxu0 0.0
    %1257 = vmatpush.xpose.msra.mxu0 0.0
    %1258 = vmatpush.xpose.msra.mxu0 0.0
    %1259 = vmatpush.xpose.msra.mxu0 0.0
    %1260 = vmatpush.xpose.msra.mxu0 0.0
    %1261 = vmatpush.xpose.msra.mxu0 0.0
    %1262 = vmatpush.xpose.msra.mxu0 0.0
    %1263 = vmatpush.xpose.msra.mxu0 %v1247
    %1264 = vmatpush.xpose.msra.mxu0 %v1245
    %1265 = vmatmul.f32.gmra.mxu0 %v1241
    %v1266 = vpop.f32.mrf.mxu0
    %v1267 = vadd.f32 %v310, %v1266
    %1268 = vmatmul.f32.gmra.mxu0 %v1243
    %v1269 = vpop.f32.mrf.mxu0
    %v1270 = vadd.f32 %v311, %v1269
    %1271 = vdwg.mxu0
    %v1272 = vsel %vm388, %v1267, -inf
    %1273 = vmax.xlane.f32.xlu0 %v1272
    %v1274 = vpop.xlane.xlu0 %1273
    %v1275 = vsel %vm388, %v1270, -inf
    %1276 = vmax.xlane.f32.xlu0 %v1275
    %v1277 = vpop.xlane.xlu0 %1276
    %v1278 = vsub.f32 %v1267, %v1274
    %v1279 = vsub.f32 %v1270, %v1277
    %v1280 = vmul.f32 %v1278, 1.442695
    %v1281 = vpow.pop %v1280
    %v1282 = vmul.f32 %v1279, 1.442695
    %v1283 = vpow.pop %v1282
    %v1284 = vsel %vm388, %v1281, 0.0
    %1285 = vadd.xlane.f32.xlu0 %v1284
    %v1286 = vpop.xlane.xlu0 %1285
    %v1287 = vsel %vm388, %v1283, 0.0
    %1288 = vadd.xlane.f32.xlu0 %v1287
    %v1289 = vpop.xlane.xlu0 %1288
    %v1290 = vrcp.pop %v1286
    %v1291 = vrcp.pop %v1289
    %v1292 = vmul.f32 %v1281, %v1290
    %v1293 = vmul.f32 %v1283, %v1291
    %1294 = vrot.lane.b32.xlu0 %v1038, 48
    %v1295 = vpop.permute.xlu0 %1294
    %1296 = vrot.lane.b32.xlu0 %v1041, 48
    %v1297 = vpop.permute.xlu0 %1296
    %v1301 = vsel %vm388, %v1292, 0
    %v1304 = vsel %vm388, %v1293, 0
    %1306 = vmatpush.msra.mxu0 0.0
    %1307 = vmatpush.msra.mxu0 0.0
    %1308 = vmatpush.msra.mxu0 0.0
    %1309 = vmatpush.msra.mxu0 0.0
    %1310 = vmatpush.msra.mxu0 0.0
    %1311 = vmatpush.msra.mxu0 0.0
    %1312 = vmatpush.msra.mxu0 0.0
    %1313 = vmatpush.msra.mxu0 0.0
    %1314 = vmatpush.msra.mxu0 0.0
    %1315 = vmatpush.msra.mxu0 0.0
    %1316 = vmatpush.msra.mxu0 0.0
    %1317 = vmatpush.msra.mxu0 0.0
    %1318 = vmatpush.msra.mxu0 0.0
    %1319 = vmatpush.msra.mxu0 0.0
    %1320 = vmatpush.msra.mxu0 %v1297
    %1321 = vmatpush.msra.mxu0 %v1295
    %1322 = vmatmul.f32.gmra.mxu0 %v1301
    %v1323 = vpop.f32.mrf.mxu0
    %v1324 = vadd.f32 0.0, %v1323
    %1325 = vmatmul.f32.gmra.mxu0 %v1304
    %v1326 = vpop.f32.mrf.mxu0
    %v1327 = vadd.f32 0.0, %v1326
    %1328 = vdwg.mxu0
    %1329 = vrot.lane.b32.xlu0 %v1038, 104
    %v1330 = vpop.permute.xlu0 %1329
    %1331 = vrot.lane.b32.xlu0 %v1041, 104
    %v1332 = vpop.permute.xlu0 %1331
    %1333 = vrot.lane.b32.xlu0 %v1038, 72
    %v1334 = vpop.permute.xlu0 %1333
    %1335 = vrot.lane.b32.xlu0 %v1041, 72
    %v1336 = vpop.permute.xlu0 %1335
    %v1337 = vsel %vm356, %v1330, 0
    %v1339 = vsel %vm356, %v1332, 0
    %v1341 = vsel %vm356, %v1334, 0
    %v1343 = vsel %vm356, %v1336, 0
    %1345 = vmatpush.xpose.msra.mxu0 0.0
    %1346 = vmatpush.xpose.msra.mxu0 0.0
    %1347 = vmatpush.xpose.msra.mxu0 0.0
    %1348 = vmatpush.xpose.msra.mxu0 0.0
    %1349 = vmatpush.xpose.msra.mxu0 0.0
    %1350 = vmatpush.xpose.msra.mxu0 0.0
    %1351 = vmatpush.xpose.msra.mxu0 0.0
    %1352 = vmatpush.xpose.msra.mxu0 0.0
    %1353 = vmatpush.xpose.msra.mxu0 0.0
    %1354 = vmatpush.xpose.msra.mxu0 0.0
    %1355 = vmatpush.xpose.msra.mxu0 0.0
    %1356 = vmatpush.xpose.msra.mxu0 0.0
    %1357 = vmatpush.xpose.msra.mxu0 0.0
    %1358 = vmatpush.xpose.msra.mxu0 0.0
    %1359 = vmatpush.xpose.msra.mxu0 %v1343
    %1360 = vmatpush.xpose.msra.mxu0 %v1341
    %1361 = vmatmul.f32.gmra.mxu0 %v1337
    %v1362 = vpop.f32.mrf.mxu0
    %v1363 = vadd.f32 %v310, %v1362
    %1364 = vmatmul.f32.gmra.mxu0 %v1339
    %v1365 = vpop.f32.mrf.mxu0
    %v1366 = vadd.f32 %v311, %v1365
    %1367 = vdwg.mxu0
    %v1368 = vsel %vm388, %v1363, -inf
    %1369 = vmax.xlane.f32.xlu0 %v1368
    %v1370 = vpop.xlane.xlu0 %1369
    %v1371 = vsel %vm388, %v1366, -inf
    %1372 = vmax.xlane.f32.xlu0 %v1371
    %v1373 = vpop.xlane.xlu0 %1372
    %v1374 = vsub.f32 %v1363, %v1370
    %v1375 = vsub.f32 %v1366, %v1373
    %v1376 = vmul.f32 %v1374, 1.442695
    %v1377 = vpow.pop %v1376
    %v1378 = vmul.f32 %v1375, 1.442695
    %v1379 = vpow.pop %v1378
    %v1380 = vsel %vm388, %v1377, 0.0
    %1381 = vadd.xlane.f32.xlu0 %v1380
    %v1382 = vpop.xlane.xlu0 %1381
    %v1383 = vsel %vm388, %v1379, 0.0
    %1384 = vadd.xlane.f32.xlu0 %v1383
    %v1385 = vpop.xlane.xlu0 %1384
    %v1386 = vrcp.pop %v1382
    %v1387 = vrcp.pop %v1385
    %v1388 = vmul.f32 %v1377, %v1386
    %v1389 = vmul.f32 %v1379, %v1387
    %1390 = vrot.lane.b32.xlu0 %v1038, 40
    %v1391 = vpop.permute.xlu0 %1390
    %1392 = vrot.lane.b32.xlu0 %v1041, 40
    %v1393 = vpop.permute.xlu0 %1392
    %v1397 = vsel %vm388, %v1388, 0
    %v1400 = vsel %vm388, %v1389, 0
    %1402 = vmatpush.msra.mxu0 0.0
    %1403 = vmatpush.msra.mxu0 0.0
    %1404 = vmatpush.msra.mxu0 0.0
    %1405 = vmatpush.msra.mxu0 0.0
    %1406 = vmatpush.msra.mxu0 0.0
    %1407 = vmatpush.msra.mxu0 0.0
    %1408 = vmatpush.msra.mxu0 0.0
    %1409 = vmatpush.msra.mxu0 0.0
    %1410 = vmatpush.msra.mxu0 0.0
    %1411 = vmatpush.msra.mxu0 0.0
    %1412 = vmatpush.msra.mxu0 0.0
    %1413 = vmatpush.msra.mxu0 0.0
    %1414 = vmatpush.msra.mxu0 0.0
    %1415 = vmatpush.msra.mxu0 0.0
    %1416 = vmatpush.msra.mxu0 %v1393
    %1417 = vmatpush.msra.mxu0 %v1391
    %1418 = vmatmul.f32.gmra.mxu0 %v1397
    %v1419 = vpop.f32.mrf.mxu0
    %v1420 = vadd.f32 0.0, %v1419
    %1421 = vmatmul.f32.gmra.mxu0 %v1400
    %v1422 = vpop.f32.mrf.mxu0
    %v1423 = vadd.f32 0.0, %v1422
    %1424 = vdwg.mxu0
    %1427 = vrot.lane.b32.xlu0 %v1228, 8
    %v1428 = vpop.permute.xlu0 %1427
    %1429 = vrot.lane.b32.xlu0 %v1231, 8
    %v1430 = vpop.permute.xlu0 %1429
    %1435 = vrot.lane.b32.xlu0 %v1324, 16
    %v1436 = vpop.permute.xlu0 %1435
    %1437 = vrot.lane.b32.xlu0 %v1327, 16
    %v1438 = vpop.permute.xlu0 %1437
    %1443 = vrot.lane.b32.xlu0 %v1420, 24
    %v1444 = vpop.permute.xlu0 %1443
    %1445 = vrot.lane.b32.xlu0 %v1423, 24
    %v1446 = vpop.permute.xlu0 %1445
    %v1449 = vsel %vm356, %v1132, %v1428
    %v1450 = vsel %vm356, %v1135, %v1430
    %v1451 = vsel %vm388, %v1449, %v1436
    %v1452 = vsel %vm388, %v1450, %v1438
    %v1453 = vsel %vm762, %v1451, %v1444
    %v1454 = vsel %vm762, %v1452, %v1446
    %v1455 = vld [vmem:[%s39] sm:$0xff]
    %v1456 = vld [vmem:[%s39 + $0x8] sm:$0xff]
    %v1457 = vld [vmem:[%s39 + $0x10] sm:$0xff]
    %v1458 = vld [vmem:[%s39 + $0x18] sm:$0xff]
    %v1459 = vld [vmem:[%s41] sm:$0x1]
    %v1461 = vperm.slane %v1459, 0
    %v1464 = vsel %vm320, %v1453, 0
    %v1467 = vsel %vm320, %v1454, 0
    %1469 = vmatpush.msra.mxu0 0.0
    %1470 = vmatpush.msra.mxu0 0.0
    %1471 = vmatpush.msra.mxu0 0.0
    %1472 = vmatpush.msra.mxu0 0.0
    %1473 = vmatpush.msra.mxu0 0.0
    %1474 = vmatpush.msra.mxu0 0.0
    %1475 = vmatpush.msra.mxu0 0.0
    %1476 = vmatpush.msra.mxu0 0.0
    %1477 = vmatpush.msra.mxu0 0.0
    %1478 = vmatpush.msra.mxu0 0.0
    %1479 = vmatpush.msra.mxu0 0.0
    %1480 = vmatpush.msra.mxu0 0.0
    %1481 = vmatpush.msra.mxu0 %v1458
    %1482 = vmatpush.msra.mxu0 %v1457
    %1483 = vmatpush.msra.mxu0 %v1456
    %1484 = vmatpush.msra.mxu0 %v1455
    %1485 = vmatmul.f32.gmra.mxu0 %v1464
    %v1486 = vpop.f32.mrf.mxu0
    %v1487 = vadd.f32 %v1461, %v1486
    %1488 = vmatmul.f32.gmra.mxu0 %v1467
    %v1489 = vpop.f32.mrf.mxu0
    %v1490 = vadd.f32 %v1461, %v1489
    %1491 = vdwg.mxu0
    %v1492 = vadd.f32 %v1004, %v1487
    %v1493 = vadd.f32 %v1005, %v1490
    %v1494 = vld [vmem:[%s43] sm:$0x1]
    %v1495 = vld [vmem:[%s45] sm:$0x1]
    %v1496 = vsel %vm320, %v1492, 0.0
    %1497 = vadd.xlane.f32.xlu0 %v1496
    %v1498 = vpop.xlane.xlu0 %1497
    %v1499 = vsel %vm320, %v1493, 0.0
    %1500 = vadd.xlane.f32.xlu0 %v1499
    %v1501 = vpop.xlane.xlu0 %1500
    %v1502 = vmul.f32 %v1498, %v818
    %v1503 = vmul.f32 %v1501, %v818
    %v1504 = vsub.f32 %v1492, %v1502
    %v1505 = vsub.f32 %v1493, %v1503
    %v1506 = vmul.f32 %v1504, %v1504
    %v1507 = vmul.f32 %v1505, %v1505
    %v1508 = vsel %vm320, %v1506, 0.0
    %1509 = vadd.xlane.f32.xlu0 %v1508
    %v1510 = vpop.xlane.xlu0 %1509
    %v1511 = vsel %vm320, %v1507, 0.0
    %1512 = vadd.xlane.f32.xlu0 %v1511
    %v1513 = vpop.xlane.xlu0 %1512
    %v1514 = vmul.f32 %v1510, %v818
    %v1515 = vmul.f32 %v1513, %v818
    %v1516 = vadd.f32 %v1514, 1e-05
    %v1517 = vadd.f32 %v1515, 1e-05
    %v1518 = vrsqrt.pop %v1516
    %v1519 = vmul.f32 %v1518, %v1516
    %v1520 = vmul.f32 %v1519, %v1518
    %v1521 = vmul.f32 0.5, %v1520
    %v1522 = vsub.f32 1.5, %v1521
    %v1523 = vmul.f32 %v1518, %v1522
    %vm1524 = vweird.f32 %v1516
    %vm1525 = vweird.f32 %v1518
    %vm1526 = vmor %vm1524, %vm1525
    %v1527 = vsel %vm1526, %v1518, %v1523
    %v1528 = vrsqrt.pop %v1517
    %v1529 = vmul.f32 %v1528, %v1517
    %v1530 = vmul.f32 %v1529, %v1528
    %v1531 = vmul.f32 0.5, %v1530
    %v1532 = vsub.f32 1.5, %v1531
    %v1533 = vmul.f32 %v1528, %v1532
    %vm1534 = vweird.f32 %v1517
    %vm1535 = vweird.f32 %v1528
    %vm1536 = vmor %vm1534, %vm1535
    %v1537 = vsel %vm1536, %v1528, %v1533
    %v1538 = vmul.f32 %v1504, %v1527
    %v1539 = vmul.f32 %v1505, %v1537
    %v1541 = vperm.slane %v1494, 0
    %v1543 = vmul.f32 %v1538, %v1541
    %v1544 = vmul.f32 %v1539, %v1541
    %v1546 = vperm.slane %v1495, 0
    %v1548 = vadd.f32 %v1543, %v1546
    %v1549 = vadd.f32 %v1544, %v1546
    %v1550 = vld [vmem:[#allocation16] sm:$0xff]
    %v1551 = vld [vmem:[#allocation16 + $0x8] sm:$0xff]
    %v1552 = vld [vmem:[#allocation16 + $0x10] sm:$0xff]
    %v1553 = vld [vmem:[#allocation16 + $0x18] sm:$0xff]
    %v1554 = vld [vmem:[%s49] sm:$0x1]
    %v1556 = vperm.slane %v1554, 0
    %v1559 = vsel %vm320, %v1548, 0
    %v1562 = vsel %vm320, %v1549, 0
    %1564 = vmatpush.msra.mxu0 0.0
    %1565 = vmatpush.msra.mxu0 0.0
    %1566 = vmatpush.msra.mxu0 0.0
    %1567 = vmatpush.msra.mxu0 0.0
    %1568 = vmatpush.msra.mxu0 0.0
    %1569 = vmatpush.msra.mxu0 0.0
    %1570 = vmatpush.msra.mxu0 0.0
    %1571 = vmatpush.msra.mxu0 0.0
    %1572 = vmatpush.msra.mxu0 0.0
    %1573 = vmatpush.msra.mxu0 0.0
    %1574 = vmatpush.msra.mxu0 0.0
    %1575 = vmatpush.msra.mxu0 0.0
    %1576 = vmatpush.msra.mxu0 %v1553
    %1577 = vmatpush.msra.mxu0 %v1552
    %1578 = vmatpush.msra.mxu0 %v1551
    %1579 = vmatpush.msra.mxu0 %v1550
    %1580 = vmatmul.f32.gmra.mxu0 %v1559
    %v1581 = vpop.f32.mrf.mxu0
    %v1582 = vadd.f32 %v1556, %v1581
    %1583 = vmatmul.f32.gmra.mxu0 %v1562
    %v1584 = vpop.f32.mrf.mxu0
    %v1585 = vadd.f32 %v1556, %v1584
    %1586 = vdwg.mxu0
    %v1587 = vmax.f32 %v1582, 0.0
    %v1588 = vmax.f32 %v1585, 0.0
    %v1589 = vld [vmem:[%s51] sm:$0xff]
    %v1590 = vld [vmem:[%s51 + $0x8] sm:$0xff]
    %v1591 = vld [vmem:[%s51 + $0x10] sm:$0xff]
    %v1592 = vld [vmem:[%s51 + $0x18] sm:$0xff]
    %v1593 = vld [vmem:[%s51 + $0x20] sm:$0xff]
    %v1594 = vld [vmem:[%s51 + $0x28] sm:$0xff]
    %v1595 = vld [vmem:[%s51 + $0x30] sm:$0xff]
    %v1596 = vld [vmem:[%s51 + $0x38] sm:$0xff]
    %v1597 = vld [vmem:[%s53] sm:$0x1]
    %v1599 = vperm.slane %v1597, 0
    %v1602 = vsel %vm918, %v1587, 0
    %v1605 = vsel %vm918, %v1588, 0
    %1607 = vmatpush.msra.mxu0 0.0
    %1608 = vmatpush.msra.mxu0 0.0
    %1609 = vmatpush.msra.mxu0 0.0
    %1610 = vmatpush.msra.mxu0 0.0
    %1611 = vmatpush.msra.mxu0 0.0
    %1612 = vmatpush.msra.mxu0 0.0
    %1613 = vmatpush.msra.mxu0 0.0
    %1614 = vmatpush.msra.mxu0 0.0
    %1615 = vmatpush.msra.mxu0 %v1596
    %1616 = vmatpush.msra.mxu0 %v1595
    %1617 = vmatpush.msra.mxu0 %v1594
    %1618 = vmatpush.msra.mxu0 %v1593
    %1619 = vmatpush.msra.mxu0 %v1592
    %1620 = vmatpush.msra.mxu0 %v1591
    %1621 = vmatpush.msra.mxu0 %v1590
    %1622 = vmatpush.msra.mxu0 %v1589
    %1623 = vmatmul.f32.gmra.mxu0 %v1602
    %v1624 = vpop.f32.mrf.mxu0
    %v1625 = vadd.f32 %v1599, %v1624
    %1626 = vmatmul.f32.gmra.mxu0 %v1605
    %v1627 = vpop.f32.mrf.mxu0
    %v1628 = vadd.f32 %v1599, %v1627
    %1629 = vdwg.mxu0
    %v1630 = vadd.f32 %v1548, %v1625
    %v1631 = vadd.f32 %v1549, %v1628
    %v1632 = vld [vmem:[%s55] sm:$0x1]
    %v1633 = vld [vmem:[%s57] sm:$0x1]
    %v1634 = vsel %vm320, %v1630, 0.0
    %1635 = vadd.xlane.f32.xlu0 %v1634
    %v1636 = vpop.xlane.xlu0 %1635
    %v1637 = vsel %vm320, %v1631, 0.0
    %1638 = vadd.xlane.f32.xlu0 %v1637
    %v1639 = vpop.xlane.xlu0 %1638
    %v1640 = vmul.f32 %v1636, %v818
    %v1641 = vmul.f32 %v1639, %v818
    %v1642 = vsub.f32 %v1630, %v1640
    %v1643 = vsub.f32 %v1631, %v1641
    %v1644 = vmul.f32 %v1642, %v1642
    %v1645 = vmul.f32 %v1643, %v1643
    %v1646 = vsel %vm320, %v1644, 0.0
    %1647 = vadd.xlane.f32.xlu0 %v1646
    %v1648 = vpop.xlane.xlu0 %1647
    %v1649 = vsel %vm320, %v1645, 0.0
    %1650 = vadd.xlane.f32.xlu0 %v1649
    %v1651 = vpop.xlane.xlu0 %1650
    %v1652 = vmul.f32 %v1648, %v818
    %v1653 = vmul.f32 %v1651, %v818
    %v1654 = vadd.f32 %v1652, 1e-05
    %v1655 = vadd.f32 %v1653, 1e-05
    %v1656 = vrsqrt.pop %v1654
    %v1657 = vmul.f32 %v1656, %v1654
    %v1658 = vmul.f32 %v1657, %v1656
    %v1659 = vmul.f32 0.5, %v1658
    %v1660 = vsub.f32 1.5, %v1659
    %v1661 = vmul.f32 %v1656, %v1660
    %vm1662 = vweird.f32 %v1654
    %vm1663 = vweird.f32 %v1656
    %vm1664 = vmor %vm1662, %vm1663
    %v1665 = vsel %vm1664, %v1656, %v1661
    %v1666 = vrsqrt.pop %v1655
    %v1667 = vmul.f32 %v1666, %v1655
    %v1668 = vmul.f32 %v1667, %v1666
    %v1669 = vmul.f32 0.5, %v1668
    %v1670 = vsub.f32 1.5, %v1669
    %v1671 = vmul.f32 %v1666, %v1670
    %vm1672 = vweird.f32 %v1655
    %vm1673 = vweird.f32 %v1666
    %vm1674 = vmor %vm1672, %vm1673
    %v1675 = vsel %vm1674, %v1666, %v1671
    %v1676 = vmul.f32 %v1642, %v1665
    %v1677 = vmul.f32 %v1643, %v1675
    %v1679 = vperm.slane %v1632, 0
    %v1681 = vmul.f32 %v1676, %v1679
    %v1682 = vmul.f32 %v1677, %v1679
    %v1684 = vperm.slane %v1633, 0
    %v1686 = vadd.f32 %v1681, %v1684
    %v1687 = vadd.f32 %v1682, %v1684
    %v1688 = vld [vmem:[%s59] sm:$0xff]
    %v1689 = vld [vmem:[%s59 + $0x8] sm:$0xff]
    %v1690 = vld [vmem:[%s59 + $0x10] sm:$0xff]
    %v1691 = vld [vmem:[%s59 + $0x18] sm:$0xff]
    %v1692 = vld [vmem:[%s61] sm:$0x1]
    %v1694 = vperm.slane %v1692, 0
    %v1697 = vsel %vm320, %v1686, 0
    %v1700 = vsel %vm320, %v1687, 0
    %1702 = vmatpush.msra.mxu0 0.0
    %1703 = vmatpush.msra.mxu0 0.0
    %1704 = vmatpush.msra.mxu0 0.0
    %1705 = vmatpush.msra.mxu0 0.0
    %1706 = vmatpush.msra.mxu0 0.0
    %1707 = vmatpush.msra.mxu0 0.0
    %1708 = vmatpush.msra.mxu0 0.0
    %1709 = vmatpush.msra.mxu0 0.0
    %1710 = vmatpush.msra.mxu0 0.0
    %1711 = vmatpush.msra.mxu0 0.0
    %1712 = vmatpush.msra.mxu0 0.0
    %1713 = vmatpush.msra.mxu0 0.0
    %1714 = vmatpush.msra.mxu0 %v1691
    %1715 = vmatpush.msra.mxu0 %v1690
    %1716 = vmatpush.msra.mxu0 %v1689
    %1717 = vmatpush.msra.mxu0 %v1688
    %1718 = vmatmul.f32.gmra.mxu0 %v1697
    %v1719 = vpop.f32.mrf.mxu0
    %v1720 = vadd.f32 %v1694, %v1719
    %1721 = vmatmul.f32.gmra.mxu0 %v1700
    %v1722 = vpop.f32.mrf.mxu0
    %v1723 = vadd.f32 %v1694, %v1722
    %1724 = vdwg.mxu0
    %v1725 = vmax.f32 %v1720, 0.0
    %v1726 = vmax.f32 %v1723, 0.0
    %v1727 = vld [vmem:[%s63] sm:$0xff]
    %v1728 = vld [vmem:[%s63 + $0x8] sm:$0xff]
    %v1729 = vld [vmem:[%s65] sm:$0x1]
    %v1731 = vperm.slane %v1729, 0
    %v1734 = vsel %vm388, %v1725, 0
    %v1737 = vsel %vm388, %v1726, 0
    %1739 = vmatpush.msra.mxu0 0.0
    %1740 = vmatpush.msra.mxu0 0.0
    %1741 = vmatpush.msra.mxu0 0.0
    %1742 = vmatpush.msra.mxu0 0.0
    %1743 = vmatpush.msra.mxu0 0.0
    %1744 = vmatpush.msra.mxu0 0.0
    %1745 = vmatpush.msra.mxu0 0.0
    %1746 = vmatpush.msra.mxu0 0.0
    %1747 = vmatpush.msra.mxu0 0.0
    %1748 = vmatpush.msra.mxu0 0.0
    %1749 = vmatpush.msra.mxu0 0.0
    %1750 = vmatpush.msra.mxu0 0.0
    %1751 = vmatpush.msra.mxu0 0.0
    %1752 = vmatpush.msra.mxu0 0.0
    %1753 = vmatpush.msra.mxu0 %v1728
    %1754 = vmatpush.msra.mxu0 %v1727
    %1755 = vmatmul.f32.gmra.mxu0 %v1734
    %v1756 = vpop.f32.mrf.mxu0
    %v1757 = vadd.f32 %v1731, %v1756
    %1758 = vmatmul.f32.gmra.mxu0 %v1737
    %v1759 = vpop.f32.mrf.mxu0
    %v1760 = vadd.f32 %v1731, %v1759
    %1761 = vdwg.mxu0
    %1762 = vst [vmem:[#allocation17] sm:$0xff] %v1757
    %1763 = vst [vmem:[#allocation17 + $0x8] sm:$0xff] %v1760
    // Predicated region
    $region170: #{tpu_custom_call.1} parent=1 // pred_check
      _
    $region171: #{tpu_custom_call.1} parent=1 // pred_check_branch
      %1765 = sbr.rel (0) target = $region173
    $region172: #{tpu_custom_call.1} parent=1 // pred_region
      %1767 = vsyncadd [#allocation4], 0
      %s1768 = sshll.u32 [#allocation17], 4
      %s1769 = int_to_ptr.vmem [resolvable:$true] %s1768
      %s1770 = sshll.u32 %s67, 4
      %s1771 = int_to_ptr.hbm [resolvable:$true] %s1770
      %1776 = dma.vmem_to_hbm [thread:$0]  %s1769, 256, %s1771, [#allocation4], 128, 128, 8
    $region173: #{tpu_custom_call.1} parent=1 // pred_fallthru
      _
    // Predicated region
    $region174: #{tpu_custom_call.1} parent=1 // pred_check
      _
    $region175: #{tpu_custom_call.1} parent=1 // pred_check_branch
      %1778 = sbr.rel (0) target = $region177
    $region176: #{tpu_custom_call.1} parent=1 // pred_region
      %1780 = dma.done [#allocation4], 256
    $region177: #{tpu_custom_call.1} parent=1 // pred_fallthru
      _
    %1781 = vsyncpa [#allocation3], 1
    %1782 = vsyncpa [#allocation6], 1
    %1783 = vsyncpa [#allocation9], 1
    %1784 = vsyncpa [#allocation12], 1
    %1785 = vsyncpa [#allocation15], 1
    %1786 = vsyncpa [#allocation4], 1

</llo_original>
